<compile_context>
chip_gen: v6e
topology: v6e:2x2x1
jax: 0.10.0
libtpu: 0.0.40
codegen_flags: <defaults>
</compile_context>

<pallas_src>
import functools
import math

import jax
import jax.numpy as jnp
from jax.experimental import pallas as pl
from jax.experimental.pallas import tpu as pltpu

EPS = 1e-5
NEG_BIG = float(jnp.finfo(jnp.float32).min) / 2.0   # finite mask fill (NaN-safe)


def _layernorm(x, scale, shift):
    # x: (rows, D) f32; scale/shift: (1, D) f32; unbiased=False variance.
    mean = jnp.mean(x, axis=-1, keepdims=True)
    var = jnp.mean((x - mean) ** 2, axis=-1, keepdims=True)
    return scale * (x - mean) / jnp.sqrt(var + EPS) + shift


# ---------------------------------------------------------------------------
# Kernel 1: the whole transformer stack.
# grid = (B, L): batch parallel (outer), layer arbitrary (inner).
# The residual stream lives in the output VMEM block across the layer axis.
# ---------------------------------------------------------------------------
def transformer_layers_kernel(x_ref, wqkv_ref, wo_ref, bo_ref,
                              ln1s_ref, ln1b_ref, ln2s_ref, ln2b_ref,
                              o_ref, *, num_heads):
    l = pl.program_id(1)

    @pl.when(l == 0)
    def _():
        o_ref[...] = x_ref[...]          # seed the residual stream once per row

    x = o_ref[0]                          # (T, D) f32, carried across layers
    T, D = x.shape
    H = num_heads
    hd = D // H
    inv_sqrt_hd = 1.0 / math.sqrt(hd)

    # ---- LayerNorm 1 (f32) --------------------------------------------------
    h = _layernorm(x, ln1s_ref[0], ln1b_ref[0])

    # ---- fused QKV projection: one bf16 MXU matmul, f32 accumulation --------
    qkv = jnp.dot(h.astype(jnp.bfloat16), wqkv_ref[0],
                  preferred_element_type=jnp.float32)            # (T, 3D) f32

    # ---- head-major (H, T, hd): lane-slice + leading-axis stack only --------
    def split_heads(base):
        return jnp.stack(
            [qkv[:, base + hh * hd: base + (hh + 1) * hd] for hh in range(H)],
            axis=0).astype(jnp.bfloat16)                          # (H, T, hd)

    q = split_heads(0)
    k = split_heads(D)
    v = split_heads(2 * D)

    # ---- batched-head attention (scores / softmax in f32) -------------------
    row = jax.lax.broadcasted_iota(jnp.int32, (T, T), 0)
    col = jax.lax.broadcasted_iota(jnp.int32, (T, T), 1)
    causal = col > row                                            # (T, T)

    s = jnp.einsum('hqd,hkd->hqk', q, k,
                   preferred_element_type=jnp.float32) * inv_sqrt_hd
    s = jnp.where(causal[None, :, :], NEG_BIG, s)
    s = s - jnp.max(s, axis=-1, keepdims=True)
    p = jnp.exp(s)
    w = p * pl.reciprocal(jnp.sum(p, axis=-1, keepdims=True), approx=True)

    ctx = jnp.einsum('hqk,hkd->hqd', w.astype(jnp.bfloat16), v,
                     preferred_element_type=jnp.float32)          # (H, T, hd)
    ctx = jnp.concatenate([ctx[hh] for hh in range(H)], axis=-1)  # (T, D)

    # ---- output projection + residual ----------------------------------------
    att = jnp.dot(ctx.astype(jnp.bfloat16), wo_ref[0],
                  preferred_element_type=jnp.float32) + bo_ref[0]
    x = x + att                                                   # shortcut 1

    # FeedForward.forward in the reference is identity -> second half reduces
    # to x + LayerNorm2(x).
    x = x + _layernorm(x, ln2s_ref[0], ln2b_ref[0])               # shortcut 2

    o_ref[0] = x.astype(o_ref.dtype)


def run_transformer_layers(x, prep, num_heads):
    B, T, D = x.shape
    wqkv, wo, bo = prep['Wqkv_t'], prep['Wo_t'], prep['bo']
    L = wqkv.shape[0]

    kern = functools.partial(transformer_layers_kernel, num_heads=num_heads)
    act_spec = pl.BlockSpec((1, T, D), lambda b, l: (b, 0, 0))

    def layer_spec(*shape):
        return pl.BlockSpec((1,) + shape, lambda b, l: (l, 0, 0))

    # Explicit VMEM budget: double-buffered blocks + in-kernel temporaries,
    # generous headroom, capped at 64 MiB (v7x physical VMEM per TC).
    blk = 2 * (2 * T * D * 4 + 3 * D * D * 2 + D * D * 2 + 5 * D * 4)
    tmp = 2 * (3 * T * D * 4 + 4 * num_heads * T * T * 4 + 6 * T * D * 4)
    vmem_limit = int(min(64 * 2**20, max(32 * 2**20, blk + tmp)))

    return pl.pallas_call(
        kern,
        out_shape=jax.ShapeDtypeStruct((B, T, D), jnp.float32),
        grid=(B, L),
        in_specs=[
            act_spec,                       # x (residual-stream seed)
            layer_spec(D, 3 * D),           # fused Wqkv  [d_in, 3*d_out] bf16
            layer_spec(D, D),               # Wo          [d_in, d_out]   bf16
            layer_spec(1, D),               # out_proj bias
            layer_spec(1, D),               # ln1 scale
            layer_spec(1, D),               # ln1 shift
            layer_spec(1, D),               # ln2 scale
            layer_spec(1, D),               # ln2 shift
        ],
        out_specs=act_spec,
        compiler_params=pltpu.CompilerParams(
            dimension_semantics=("parallel", "arbitrary"),
            vmem_limit_bytes=vmem_limit),
    )(x, wqkv, wo, bo, prep['ln1s'], prep['ln1b'], prep['ln2s'], prep['ln2b'])


# ---------------------------------------------------------------------------
# Kernel 2: final LayerNorm + output head, tiled over (rows, padded vocab).
# ---------------------------------------------------------------------------
def final_head_kernel(x_ref, lns_ref, lnb_ref, wout_ref, o_ref):
    h = _layernorm(x_ref[...], lns_ref[...], lnb_ref[...])        # f32
    o_ref[...] = jnp.dot(h.astype(jnp.bfloat16), wout_ref[...],
                         preferred_element_type=jnp.float32).astype(o_ref.dtype)


def run_final_head(x_flat, lns, lnb, wout_t):
    BT, D = x_flat.shape
    Vp = wout_t.shape[1]                     # padded vocab, multiple of 128
    if BT % 8 == 0:
        tm = max(d for d in range(8, min(BT, 512) + 1, 8) if BT % d == 0)
    else:
        tm = BT                              # tiny / ragged: full-row block
    tn = max(d for d in range(128, min(Vp, 2048) + 1, 128) if Vp % d == 0)

    blk = 2 * (tm * D * 4 + 2 * D * 4 + D * tn * 2 + tm * tn * 4)
    vmem_limit = int(min(64 * 2**20, max(32 * 2**20, 2 * blk)))

    return pl.pallas_call(
        final_head_kernel,
        out_shape=jax.ShapeDtypeStruct((BT, Vp), jnp.float32),
        grid=(BT // tm, Vp // tn),
        in_specs=[
            pl.BlockSpec((tm, D), lambda m, n: (m, 0)),
            pl.BlockSpec((1, D), lambda m, n: (0, 0)),
            pl.BlockSpec((1, D), lambda m, n: (0, 0)),
            pl.BlockSpec((D, tn), lambda m, n: (0, n)),
        ],
        out_specs=pl.BlockSpec((tm, tn), lambda m, n: (m, n)),
        compiler_params=pltpu.CompilerParams(
            dimension_semantics=("parallel", "parallel"),
            vmem_limit_bytes=vmem_limit),
    )(x_flat, lns, lnb, wout_t)


# ---------------------------------------------------------------------------
# Parameters: PyTorch-style shapes ([d_out, d_in]) + one-time kernel prep.
# ---------------------------------------------------------------------------
def init_params(cfg, key):
    V, C, D = cfg['vocab_size'], cfg['context_length'], cfg['emb_dim']
    keys = jax.random.split(key, 4 + 6 * cfg['n_layers'])
    ki = iter(keys)
    params = {
        'tok_emb': jax.random.normal(next(ki), (V, D), jnp.float32) * 0.02,
        'pos_emb': jax.random.normal(next(ki), (C, D), jnp.float32) * 0.02,
        'out_head': jax.random.normal(next(ki), (V, D), jnp.float32) * 0.02,  # [d_out, d_in]
        'final_norm_scale': jnp.ones((D,), jnp.float32),
        'final_norm_shift': jnp.ones((D,), jnp.float32),
        'layers': [],
    }
    for _ in range(cfg['n_layers']):
        params['layers'].append({
            'Wq': jax.random.normal(next(ki), (D, D), jnp.float32) * 0.02,  # [d_out, d_in]
            'Wk': jax.random.normal(next(ki), (D, D), jnp.float32) * 0.02,
            'Wv': jax.random.normal(next(ki), (D, D), jnp.float32) * 0.02,
            'Wo': jax.random.normal(next(ki), (D, D), jnp.float32) * 0.02,
            'bo': jax.random.normal(next(ki), (D,), jnp.float32) * 0.02,
            'ln1_scale': jnp.ones((D,), jnp.float32),
            'ln1_shift': jnp.ones((D,), jnp.float32),
            'ln2_scale': jnp.ones((D,), jnp.float32),
            'ln2_shift': jnp.ones((D,), jnp.float32),
        })
    return params


def prepare_params(params, cfg):
    """One-time prep: transpose, fuse QKV, stack layers, bf16-cast, pad vocab."""
    D, V, L = cfg['emb_dim'], cfg['vocab_size'], cfg['n_layers']
    Vp = ((V + 127) // 128) * 128
    layers = params['layers']

    wqkv_t = jnp.stack([jnp.concatenate([lp['Wq'].T, lp['Wk'].T, lp['Wv'].T], axis=1)
                        for lp in layers]).astype(jnp.bfloat16)           # (L, D, 3D)
    wo_t = jnp.stack([lp['Wo'].T for lp in layers]).astype(jnp.bfloat16)  # (L, D, D)
    bo = jnp.stack([lp['bo'] for lp in layers]).reshape(L, 1, D)

    def stack_ln(name):
        return jnp.stack([lp[name] for lp in layers]).reshape(L, 1, D)

    out_head_t = jnp.pad(params['out_head'].T, ((0, 0), (0, Vp - V)))     # (D, Vp)
    return {
        'tok_emb': params['tok_emb'],
        'pos_emb': params['pos_emb'],
        'Wqkv_t': wqkv_t, 'Wo_t': wo_t, 'bo': bo,
        'ln1s': stack_ln('ln1_scale'), 'ln1b': stack_ln('ln1_shift'),
        'ln2s': stack_ln('ln2_scale'), 'ln2b': stack_ln('ln2_shift'),
        'final_norm_scale': params['final_norm_scale'].reshape(1, D),
        'final_norm_shift': params['final_norm_shift'].reshape(1, D),
        'out_head_t': out_head_t.astype(jnp.bfloat16),
    }


# ---------------------------------------------------------------------------
# Full forward pass (embedding gather is plain-JAX glue).
# ---------------------------------------------------------------------------
def gpt_forward(prep, in_idx, cfg):
    B, T = in_idx.shape
    D, V = cfg['emb_dim'], cfg['vocab_size']
    x = prep['tok_emb'][in_idx] + prep['pos_emb'][:T][None, :, :]   # (B, T, D)
    x = run_transformer_layers(x, prep, cfg['n_heads'])
    logits = run_final_head(x.reshape(B * T, D),
                            prep['final_norm_scale'], prep['final_norm_shift'],
                            prep['out_head_t'])
    return logits[:, :V].reshape(B, T, V)


# ---------------------------------------------------------------------------
# Pure-JAX f32 reference (for correctness check).
# ---------------------------------------------------------------------------
def _ln_ref(x, s, b):
    m = x.mean(-1, keepdims=True)
    v = ((x - m) ** 2).mean(-1, keepdims=True)
    return s * (x - m) / jnp.sqrt(v + EPS) + b


def gpt_ref(params, in_idx, cfg):
    B, T = in_idx.shape
    D, H = cfg['emb_dim'], cfg['n_heads']
    hd = D // H
    x = params['tok_emb'][in_idx] + params['pos_emb'][:T][None, :, :]
    for lp in params['layers']:
        h = _ln_ref(x, lp['ln1_scale'], lp['ln1_shift'])
        q = (h @ lp['Wq'].T).reshape(B, T, H, hd).transpose(0, 2, 1, 3)
        k = (h @ lp['Wk'].T).reshape(B, T, H, hd).transpose(0, 2, 1, 3)
        v = (h @ lp['Wv'].T).reshape(B, T, H, hd).transpose(0, 2, 1, 3)
        s = jnp.einsum('bhtd,bhsd->bhts', q, k) / jnp.sqrt(jnp.float32(hd))
        mask = jnp.triu(jnp.ones((T, T), bool), k=1)
        s = jnp.where(mask[None, None], -jnp.inf, s)
        w = jax.nn.softmax(s, axis=-1)
        ctx = jnp.einsum('bhts,bhsd->bhtd', w, v).transpose(0, 2, 1, 3).reshape(B, T, D)
        x = x + (ctx @ lp['Wo'].T + lp['bo'])
        x = x + _ln_ref(x, lp['ln2_scale'], lp['ln2_shift'])    # ff is identity
    x = _ln_ref(x, params['final_norm_scale'], params['final_norm_shift'])
    return x @ params['out_head'].T


if __name__ == "__main__":
    cfg = {
        'vocab_size': 64,
        'context_length': 16,
        'emb_dim': 32,
        'n_heads': 4,
        'n_layers': 2,
        'drop_rate': 0.0,
        'qkv_bias': False,
    }
    key = jax.random.PRNGKey(0)
    pkey, ikey = jax.random.split(key)
    params = init_params(cfg, pkey)
    prep = prepare_params(params, cfg)

    B, T = 2, 8
    in_idx = jax.random.randint(ikey, (B, T), 0, cfg['vocab_size'], dtype=jnp.int32)

    logits = jax.block_until_ready(gpt_forward(prep, in_idx, cfg))
    ref = gpt_ref(params, in_idx, cfg)

    assert logits.shape == (B, T, cfg['vocab_size'])
    # bf16 matmuls with f32 accumulation -> relaxed tolerance vs f32 reference.
    assert jnp.allclose(logits, ref, atol=3e-2, rtol=3e-2), "mismatch vs JAX reference"

    print("KERNEL_OK")
</pallas_src>

<mosaic_0001>
module attributes {stable_mosaic.version = 11 : i64} {
  func.func @transformer_layers_kernel(%arg0: i32, %arg1: i32, %arg2: memref<1x8x32xf32, #tpu.memory_space<vmem>>, %arg3: memref<1x32x96xbf16, #tpu.memory_space<vmem>>, %arg4: memref<1x32x32xbf16, #tpu.memory_space<vmem>>, %arg5: memref<1x1x32xf32, #tpu.memory_space<vmem>>, %arg6: memref<1x1x32xf32, #tpu.memory_space<vmem>>, %arg7: memref<1x1x32xf32, #tpu.memory_space<vmem>>, %arg8: memref<1x1x32xf32, #tpu.memory_space<vmem>>, %arg9: memref<1x1x32xf32, #tpu.memory_space<vmem>>, %arg10: memref<1x8x32xf32, #tpu.memory_space<vmem>>) attributes {dimension_semantics = [#tpu.dimension_semantics<parallel>, #tpu.dimension_semantics<arbitrary>], iteration_bounds = array<i64: 2, 2>, scalar_prefetch = 0 : i64, scratch_operands = 0 : i64, tpu.core_type = #tpu.core_type<tc>, window_params = [{transform_indices = @transform_0, window_bounds = array<i64: 1, 8, 32>}, {transform_indices = @transform_1, window_bounds = array<i64: 1, 32, 96>}, {transform_indices = @transform_2, window_bounds = array<i64: 1, 32, 32>}, {transform_indices = @transform_3, window_bounds = array<i64: 1, 1, 32>}, {transform_indices = @transform_4, window_bounds = array<i64: 1, 1, 32>}, {transform_indices = @transform_5, window_bounds = array<i64: 1, 1, 32>}, {transform_indices = @transform_6, window_bounds = array<i64: 1, 1, 32>}, {transform_indices = @transform_7, window_bounds = array<i64: 1, 1, 32>}, {transform_indices = @transform_8, window_bounds = array<i64: 1, 8, 32>}]} {
    %c0_i32 = arith.constant 0 : i32
    %0 = arith.cmpi eq, %arg1, %c0_i32 : i32
    %1 = arith.extui %0 : i1 to i32
    %c0_i32_0 = arith.constant 0 : i32
    %2 = arith.cmpi ne, %1, %c0_i32_0 : i32
    scf.if %2 {
      %c0_44 = arith.constant 0 : index
      %c0_45 = arith.constant 0 : index
      %c0_46 = arith.constant 0 : index
      %136 = vector.load %arg2[%c0_44, %c0_45, %c0_46] : memref<1x8x32xf32, #tpu.memory_space<vmem>>, vector<1x8x32xf32>
      %c0_47 = arith.constant 0 : index
      %c0_48 = arith.constant 0 : index
      %c0_49 = arith.constant 0 : index
      %137 = vector.load %arg10[%c0_47, %c0_48, %c0_49] : memref<1x8x32xf32, #tpu.memory_space<vmem>>, vector<1x8x32xf32>
      tpu.vector_store %arg10[%c0_47, %c0_48, %c0_49], %136 {strides = array<i32>} : memref<1x8x32xf32, #tpu.memory_space<vmem>>, vector<1x8x32xf32>,
    } else {
    }
    %c0 = arith.constant 0 : index
    %c0_1 = arith.constant 0 : index
    %c0_2 = arith.constant 0 : index
    %3 = vector.load %arg10[%c0, %c0_1, %c0_2] : memref<1x8x32xf32, #tpu.memory_space<vmem>>, vector<1x8x32xf32>
    %4 = vector.shape_cast %3 : vector<1x8x32xf32> to vector<8x32xf32>
    %c0_3 = arith.constant 0 : index
    %c0_4 = arith.constant 0 : index
    %c0_5 = arith.constant 0 : index
    %5 = vector.load %arg6[%c0_3, %c0_4, %c0_5] : memref<1x1x32xf32, #tpu.memory_space<vmem>>, vector<1x1x32xf32>
    %6 = vector.shape_cast %5 : vector<1x1x32xf32> to vector<1x32xf32>
    %c0_6 = arith.constant 0 : index
    %c0_7 = arith.constant 0 : index
    %c0_8 = arith.constant 0 : index
    %7 = vector.load %arg7[%c0_6, %c0_7, %c0_8] : memref<1x1x32xf32, #tpu.memory_space<vmem>>, vector<1x1x32xf32>
    %8 = vector.shape_cast %7 : vector<1x1x32xf32> to vector<1x32xf32>
    %cst = arith.constant dense<0.000000e+00> : vector<8xf32>
    %9 = vector.multi_reduction <add>, %4, %cst [1] : vector<8x32xf32> to vector<8xf32>
    %10 = vector.shape_cast %9 : vector<8xf32> to vector<8x1xf32>
    %cst_9 = arith.constant 3.200000e+01 : f32
    %11 = vector.broadcast %cst_9 : f32 to vector<8x1xf32>
    %12 = arith.divf %10, %11 : vector<8x1xf32>
    %13 = vector.broadcast %12 : vector<8x1xf32> to vector<8x32xf32>
    %14 = arith.subf %4, %13 : vector<8x32xf32>
    %15 = arith.mulf %14, %14 : vector<8x32xf32>
    %cst_10 = arith.constant dense<0.000000e+00> : vector<8xf32>
    %16 = vector.multi_reduction <add>, %15, %cst_10 [1] : vector<8x32xf32> to vector<8xf32>
    %17 = vector.shape_cast %16 : vector<8xf32> to vector<8x1xf32>
    %cst_11 = arith.constant 3.200000e+01 : f32
    %18 = vector.broadcast %cst_11 : f32 to vector<8x1xf32>
    %19 = arith.divf %17, %18 : vector<8x1xf32>
    %20 = vector.broadcast %12 : vector<8x1xf32> to vector<8x32xf32>
    %21 = arith.subf %4, %20 : vector<8x32xf32>
    %22 = vector.broadcast %6 : vector<1x32xf32> to vector<8x32xf32>
    %23 = arith.mulf %22, %21 : vector<8x32xf32>
    %cst_12 = arith.constant 9.99999974E-6 : f32
    %24 = vector.broadcast %cst_12 : f32 to vector<8x1xf32>
    %25 = arith.addf %19, %24 : vector<8x1xf32>
    %26 = math.sqrt %25 : vector<8x1xf32>
    %27 = vector.broadcast %26 : vector<8x1xf32> to vector<8x32xf32>
    %28 = arith.divf %23, %27 : vector<8x32xf32>
    %29 = vector.broadcast %8 : vector<1x32xf32> to vector<8x32xf32>
    %30 = arith.addf %28, %29 : vector<8x32xf32>
    %31 = arith.truncf %30 : vector<8x32xf32> to vector<8x32xbf16>
    %c0_13 = arith.constant 0 : index
    %c0_14 = arith.constant 0 : index
    %c0_15 = arith.constant 0 : index
    %32 = vector.load %arg3[%c0_13, %c0_14, %c0_15] : memref<1x32x96xbf16, #tpu.memory_space<vmem>>, vector<1x32x96xbf16>
    %33 = vector.shape_cast %32 : vector<1x32x96xbf16> to vector<32x96xbf16>
    %cst_16 = arith.constant dense<0.000000e+00> : vector<8x96xf32>
    %34 = tpu.matmul %31, %33, %cst_16 {dimension_numbers = #tpu.dot_dimension_numbers<[1], [0], [0], [1], [0, 0, 1, 1], [], []>} : vector<8x32xbf16>, vector<32x96xbf16>, vector<8x96xf32> -> vector<8x96xf32>
    %35 = vector.extract_strided_slice %34 {offsets = [0, 0], sizes = [8, 8], strides = [1, 1]} : vector<8x96xf32> to vector<8x8xf32>
    %36 = vector.extract_strided_slice %34 {offsets = [0, 8], sizes = [8, 8], strides = [1, 1]} : vector<8x96xf32> to vector<8x8xf32>
    %37 = vector.extract_strided_slice %34 {offsets = [0, 16], sizes = [8, 8], strides = [1, 1]} : vector<8x96xf32> to vector<8x8xf32>
    %38 = vector.extract_strided_slice %34 {offsets = [0, 24], sizes = [8, 8], strides = [1, 1]} : vector<8x96xf32> to vector<8x8xf32>
    %39 = vector.shape_cast %35 : vector<8x8xf32> to vector<1x8x8xf32>
    %40 = vector.shape_cast %36 : vector<8x8xf32> to vector<1x8x8xf32>
    %41 = vector.shape_cast %37 : vector<8x8xf32> to vector<1x8x8xf32>
    %42 = vector.shape_cast %38 : vector<8x8xf32> to vector<1x8x8xf32>
    %43 = tpu.concatenate %39, %40, %41, %42 in 0 : vector<1x8x8xf32>, vector<1x8x8xf32>, vector<1x8x8xf32>, vector<1x8x8xf32> -> vector<4x8x8xf32>
    %44 = arith.truncf %43 : vector<4x8x8xf32> to vector<4x8x8xbf16>
    %45 = vector.extract_strided_slice %34 {offsets = [0, 32], sizes = [8, 8], strides = [1, 1]} : vector<8x96xf32> to vector<8x8xf32>
    %46 = vector.extract_strided_slice %34 {offsets = [0, 40], sizes = [8, 8], strides = [1, 1]} : vector<8x96xf32> to vector<8x8xf32>
    %47 = vector.extract_strided_slice %34 {offsets = [0, 48], sizes = [8, 8], strides = [1, 1]} : vector<8x96xf32> to vector<8x8xf32>
    %48 = vector.extract_strided_slice %34 {offsets = [0, 56], sizes = [8, 8], strides = [1, 1]} : vector<8x96xf32> to vector<8x8xf32>
    %49 = vector.shape_cast %45 : vector<8x8xf32> to vector<1x8x8xf32>
    %50 = vector.shape_cast %46 : vector<8x8xf32> to vector<1x8x8xf32>
    %51 = vector.shape_cast %47 : vector<8x8xf32> to vector<1x8x8xf32>
    %52 = vector.shape_cast %48 : vector<8x8xf32> to vector<1x8x8xf32>
    %53 = tpu.concatenate %49, %50, %51, %52 in 0 : vector<1x8x8xf32>, vector<1x8x8xf32>, vector<1x8x8xf32>, vector<1x8x8xf32> -> vector<4x8x8xf32>
    %54 = arith.truncf %53 : vector<4x8x8xf32> to vector<4x8x8xbf16>
    %55 = vector.extract_strided_slice %34 {offsets = [0, 64], sizes = [8, 8], strides = [1, 1]} : vector<8x96xf32> to vector<8x8xf32>
    %56 = vector.extract_strided_slice %34 {offsets = [0, 72], sizes = [8, 8], strides = [1, 1]} : vector<8x96xf32> to vector<8x8xf32>
    %57 = vector.extract_strided_slice %34 {offsets = [0, 80], sizes = [8, 8], strides = [1, 1]} : vector<8x96xf32> to vector<8x8xf32>
    %58 = vector.extract_strided_slice %34 {offsets = [0, 88], sizes = [8, 8], strides = [1, 1]} : vector<8x96xf32> to vector<8x8xf32>
    %59 = vector.shape_cast %55 : vector<8x8xf32> to vector<1x8x8xf32>
    %60 = vector.shape_cast %56 : vector<8x8xf32> to vector<1x8x8xf32>
    %61 = vector.shape_cast %57 : vector<8x8xf32> to vector<1x8x8xf32>
    %62 = vector.shape_cast %58 : vector<8x8xf32> to vector<1x8x8xf32>
    %63 = tpu.concatenate %59, %60, %61, %62 in 0 : vector<1x8x8xf32>, vector<1x8x8xf32>, vector<1x8x8xf32>, vector<1x8x8xf32> -> vector<4x8x8xf32>
    %64 = arith.truncf %63 : vector<4x8x8xf32> to vector<4x8x8xbf16>
    %65 = tpu.iota {dimensions = array<i32: 0>} : vector<8x8xi32>
    %66 = tpu.iota {dimensions = array<i32: 1>} : vector<8x8xi32>
    %67 = arith.cmpi sgt, %66, %65 : vector<8x8xi32>
    "tpu.trace_start"() <{level = 10 : i32, message = "hqd,hkd->hqk"}> : () -> ()
    %cst_17 = arith.constant dense<0.000000e+00> : vector<4x8x8xf32>
    %68 = tpu.matmul %44, %54, %cst_17 {dimension_numbers = #tpu.dot_dimension_numbers<[2], [2], [1], [1], [0, 0, 0, 1, 1, 1], [0], [0]>} : vector<4x8x8xbf16>, vector<4x8x8xbf16>, vector<4x8x8xf32> -> vector<4x8x8xf32>
    "tpu.trace_stop"() : () -> ()
    %cst_18 = arith.constant 0.353553385 : f32
    %69 = vector.broadcast %cst_18 : f32 to vector<4x8x8xf32>
    %70 = arith.mulf %68, %69 : vector<4x8x8xf32>
    %71 = vector.shape_cast %67 : vector<8x8xi1> to vector<1x8x8xi1>
    %cst_19 = arith.constant -1.70141173E+38 : f32
    %72 = vector.shape_cast %71 : vector<1x8x8xi1> to vector<1x8x8xi1>
    %73 = vector.broadcast %72 : vector<1x8x8xi1> to vector<4x8x8xi1>
    %74 = vector.broadcast %cst_19 : f32 to vector<4x8x8xf32>
    %75 = arith.select %73, %74, %70 : vector<4x8x8xi1>, vector<4x8x8xf32>
    %cst_20 = arith.constant dense<0xFF800000> : vector<4x8xf32>
    %76 = vector.multi_reduction <maximumf>, %75, %cst_20 [2] : vector<4x8x8xf32> to vector<4x8xf32>
    %77 = vector.shape_cast %76 : vector<4x8xf32> to vector<4x8x1xf32>
    %78 = vector.broadcast %77 : vector<4x8x1xf32> to vector<4x8x8xf32>
    %79 = arith.subf %75, %78 : vector<4x8x8xf32>
    %80 = math.exp %79 : vector<4x8x8xf32>
    %cst_21 = arith.constant dense<0.000000e+00> : vector<4x8xf32>
    %81 = vector.multi_reduction <add>, %80, %cst_21 [2] : vector<4x8x8xf32> to vector<4x8xf32>
    %82 = vector.shape_cast %81 : vector<4x8xf32> to vector<4x8x1xf32>
    %83 = tpu.reciprocal %82 {approx = true} : vector<4x8x1xf32> -> vector<4x8x1xf32>
    %84 = vector.broadcast %83 : vector<4x8x1xf32> to vector<4x8x8xf32>
    %85 = arith.mulf %80, %84 : vector<4x8x8xf32>
    %86 = arith.truncf %85 : vector<4x8x8xf32> to vector<4x8x8xbf16>
    "tpu.trace_start"() <{level = 10 : i32, message = "hqk,hkd->hqd"}> : () -> ()
    %cst_22 = arith.constant dense<0.000000e+00> : vector<4x8x8xf32>
    %87 = tpu.matmul %86, %64, %cst_22 {dimension_numbers = #tpu.dot_dimension_numbers<[2], [1], [1], [2], [0, 0, 0, 1, 1, 2], [0], [0]>} : vector<4x8x8xbf16>, vector<4x8x8xbf16>, vector<4x8x8xf32> -> vector<4x8x8xf32>
    "tpu.trace_stop"() : () -> ()
    %88 = vector.extract_strided_slice %87 {offsets = [0, 0, 0], sizes = [1, 8, 8], strides = [1, 1, 1]} : vector<4x8x8xf32> to vector<1x8x8xf32>
    %89 = vector.shape_cast %88 : vector<1x8x8xf32> to vector<8x8xf32>
    %90 = vector.extract_strided_slice %87 {offsets = [1, 0, 0], sizes = [1, 8, 8], strides = [1, 1, 1]} : vector<4x8x8xf32> to vector<1x8x8xf32>
    %91 = vector.shape_cast %90 : vector<1x8x8xf32> to vector<8x8xf32>
    %92 = vector.extract_strided_slice %87 {offsets = [2, 0, 0], sizes = [1, 8, 8], strides = [1, 1, 1]} : vector<4x8x8xf32> to vector<1x8x8xf32>
    %93 = vector.shape_cast %92 : vector<1x8x8xf32> to vector<8x8xf32>
    %94 = vector.extract_strided_slice %87 {offsets = [3, 0, 0], sizes = [1, 8, 8], strides = [1, 1, 1]} : vector<4x8x8xf32> to vector<1x8x8xf32>
    %95 = vector.shape_cast %94 : vector<1x8x8xf32> to vector<8x8xf32>
    %96 = tpu.concatenate %89, %91, %93, %95 in 1 : vector<8x8xf32>, vector<8x8xf32>, vector<8x8xf32>, vector<8x8xf32> -> vector<8x32xf32>
    %97 = arith.truncf %96 : vector<8x32xf32> to vector<8x32xbf16>
    %c0_23 = arith.constant 0 : index
    %c0_24 = arith.constant 0 : index
    %c0_25 = arith.constant 0 : index
    %98 = vector.load %arg4[%c0_23, %c0_24, %c0_25] : memref<1x32x32xbf16, #tpu.memory_space<vmem>>, vector<1x32x32xbf16>
    %99 = vector.shape_cast %98 : vector<1x32x32xbf16> to vector<32x32xbf16>
    %cst_26 = arith.constant dense<0.000000e+00> : vector<8x32xf32>
    %100 = tpu.matmul %97, %99, %cst_26 {dimension_numbers = #tpu.dot_dimension_numbers<[1], [0], [0], [1], [0, 0, 1, 1], [], []>} : vector<8x32xbf16>, vector<32x32xbf16>, vector<8x32xf32> -> vector<8x32xf32>
    %c0_27 = arith.constant 0 : index
    %c0_28 = arith.constant 0 : index
    %c0_29 = arith.constant 0 : index
    %101 = vector.load %arg5[%c0_27, %c0_28, %c0_29] : memref<1x1x32xf32, #tpu.memory_space<vmem>>, vector<1x1x32xf32>
    %102 = vector.shape_cast %101 : vector<1x1x32xf32> to vector<1x32xf32>
    %103 = vector.broadcast %102 : vector<1x32xf32> to vector<8x32xf32>
    %104 = arith.addf %100, %103 : vector<8x32xf32>
    %105 = arith.addf %4, %104 : vector<8x32xf32>
    %c0_30 = arith.constant 0 : index
    %c0_31 = arith.constant 0 : index
    %c0_32 = arith.constant 0 : index
    %106 = vector.load %arg8[%c0_30, %c0_31, %c0_32] : memref<1x1x32xf32, #tpu.memory_space<vmem>>, vector<1x1x32xf32>
    %107 = vector.shape_cast %106 : vector<1x1x32xf32> to vector<1x32xf32>
    %c0_33 = arith.constant 0 : index
    %c0_34 = arith.constant 0 : index
    %c0_35 = arith.constant 0 : index
    %108 = vector.load %arg9[%c0_33, %c0_34, %c0_35] : memref<1x1x32xf32, #tpu.memory_space<vmem>>, vector<1x1x32xf32>
    %109 = vector.shape_cast %108 : vector<1x1x32xf32> to vector<1x32xf32>
    %cst_36 = arith.constant dense<0.000000e+00> : vector<8xf32>
    %110 = vector.multi_reduction <add>, %105, %cst_36 [1] : vector<8x32xf32> to vector<8xf32>
    %111 = vector.shape_cast %110 : vector<8xf32> to vector<8x1xf32>
    %cst_37 = arith.constant 3.200000e+01 : f32
    %112 = vector.broadcast %cst_37 : f32 to vector<8x1xf32>
    %113 = arith.divf %111, %112 : vector<8x1xf32>
    %114 = vector.broadcast %113 : vector<8x1xf32> to vector<8x32xf32>
    %115 = arith.subf %105, %114 : vector<8x32xf32>
    %116 = arith.mulf %115, %115 : vector<8x32xf32>
    %cst_38 = arith.constant dense<0.000000e+00> : vector<8xf32>
    %117 = vector.multi_reduction <add>, %116, %cst_38 [1] : vector<8x32xf32> to vector<8xf32>
    %118 = vector.shape_cast %117 : vector<8xf32> to vector<8x1xf32>
    %cst_39 = arith.constant 3.200000e+01 : f32
    %119 = vector.broadcast %cst_39 : f32 to vector<8x1xf32>
    %120 = arith.divf %118, %119 : vector<8x1xf32>
    %121 = vector.broadcast %113 : vector<8x1xf32> to vector<8x32xf32>
    %122 = arith.subf %105, %121 : vector<8x32xf32>
    %123 = vector.broadcast %107 : vector<1x32xf32> to vector<8x32xf32>
    %124 = arith.mulf %123, %122 : vector<8x32xf32>
    %cst_40 = arith.constant 9.99999974E-6 : f32
    %125 = vector.broadcast %cst_40 : f32 to vector<8x1xf32>
    %126 = arith.addf %120, %125 : vector<8x1xf32>
    %127 = math.sqrt %126 : vector<8x1xf32>
    %128 = vector.broadcast %127 : vector<8x1xf32> to vector<8x32xf32>
    %129 = arith.divf %124, %128 : vector<8x32xf32>
    %130 = vector.broadcast %109 : vector<1x32xf32> to vector<8x32xf32>
    %131 = arith.addf %129, %130 : vector<8x32xf32>
    %132 = arith.addf %105, %131 : vector<8x32xf32>
    %c0_41 = arith.constant 0 : index
    %c0_42 = arith.constant 0 : index
    %c0_43 = arith.constant 0 : index
    %133 = vector.load %arg10[%c0_41, %c0_42, %c0_43] : memref<1x8x32xf32, #tpu.memory_space<vmem>>, vector<1x8x32xf32>
    %134 = vector.shape_cast %133 : vector<1x8x32xf32> to vector<8x32xf32>
    %135 = vector.shape_cast %132 : vector<8x32xf32> to vector<1x8x32xf32>
    tpu.vector_store %arg10[%c0_41, %c0_42, %c0_43], %135 {strides = array<i32>} : memref<1x8x32xf32, #tpu.memory_space<vmem>>, vector<1x8x32xf32>,
    return
  }
  func.func @transform_0(%arg0: i32, %arg1: i32) -> (i32, i32, i32) {
    %c0_i32 = arith.constant 0 : i32
    %c0_i32_0 = arith.constant 0 : i32
    %c0_i32_1 = arith.constant 0 : i32
    return %arg0, %c0_i32, %c0_i32_0 : i32, i32, i32
  }
  func.func @transform_1(%arg0: i32, %arg1: i32) -> (i32, i32, i32) {
    %c0_i32 = arith.constant 0 : i32
    %c0_i32_0 = arith.constant 0 : i32
    %c0_i32_1 = arith.constant 0 : i32
    return %arg1, %c0_i32, %c0_i32_0 : i32, i32, i32
  }
  func.func @transform_2(%arg0: i32, %arg1: i32) -> (i32, i32, i32) {
    %c0_i32 = arith.constant 0 : i32
    %c0_i32_0 = arith.constant 0 : i32
    %c0_i32_1 = arith.constant 0 : i32
    return %arg1, %c0_i32, %c0_i32_0 : i32, i32, i32
  }
  func.func @transform_3(%arg0: i32, %arg1: i32) -> (i32, i32, i32) {
    %c0_i32 = arith.constant 0 : i32
    %c0_i32_0 = arith.constant 0 : i32
    %c0_i32_1 = arith.constant 0 : i32
    return %arg1, %c0_i32, %c0_i32_0 : i32, i32, i32
  }
  func.func @transform_4(%arg0: i32, %arg1: i32) -> (i32, i32, i32) {
    %c0_i32 = arith.constant 0 : i32
    %c0_i32_0 = arith.constant 0 : i32
    %c0_i32_1 = arith.constant 0 : i32
    return %arg1, %c0_i32, %c0_i32_0 : i32, i32, i32
  }
  func.func @transform_5(%arg0: i32, %arg1: i32) -> (i32, i32, i32) {
    %c0_i32 = arith.constant 0 : i32
    %c0_i32_0 = arith.constant 0 : i32
    %c0_i32_1 = arith.constant 0 : i32
    return %arg1, %c0_i32, %c0_i32_0 : i32, i32, i32
  }
  func.func @transform_6(%arg0: i32, %arg1: i32) -> (i32, i32, i32) {
    %c0_i32 = arith.constant 0 : i32
    %c0_i32_0 = arith.constant 0 : i32
    %c0_i32_1 = arith.constant 0 : i32
    return %arg1, %c0_i32, %c0_i32_0 : i32, i32, i32
  }
  func.func @transform_7(%arg0: i32, %arg1: i32) -> (i32, i32, i32) {
    %c0_i32 = arith.constant 0 : i32
    %c0_i32_0 = arith.constant 0 : i32
    %c0_i32_1 = arith.constant 0 : i32
    return %arg1, %c0_i32, %c0_i32_0 : i32, i32, i32
  }
  func.func @transform_8(%arg0: i32, %arg1: i32) -> (i32, i32, i32) {
    %c0_i32 = arith.constant 0 : i32
    %c0_i32_0 = arith.constant 0 : i32
    %c0_i32_1 = arith.constant 0 : i32
    return %arg0, %c0_i32, %c0_i32_0 : i32, i32, i32
  }
}

</mosaic_0001>

<llo_original>
// kernel: tpu_custom_call.1
$region0: #{tpu_custom_call.1}
  #allocation0 [shape = 'u32[]', space=smem, size = 0x4, offset = 0x4, fixed_abs, tag = 'smem constant byte address 0x4 - core index']
  #allocation1 [shape = 'u32[144,128]{1,0:T(1,128)}', space=vmem, size = 0x12000, scoped, tag = 'internal scratch']
  %s0 = inlined_call_operand.hbm [shape: f32[2,8,32], index: 0, kind: input, shape index: {}]
  %s1 = inlined_call_operand.hbm [shape: bf16[2,32,96], index: 1, kind: input, shape index: {}]
  %s2 = inlined_call_operand.hbm [shape: bf16[2,32,32], index: 2, kind: input, shape index: {}]
  %s3 = inlined_call_operand.vmem [shape: f32[2,1,32], index: 3, kind: input, shape index: {}]
  %s4 = inlined_call_operand.vmem [shape: f32[2,1,32], index: 4, kind: input, shape index: {}]
  %s5 = inlined_call_operand.vmem [shape: f32[2,1,32], index: 5, kind: input, shape index: {}]
  %s6 = inlined_call_operand.vmem [shape: f32[2,1,32], index: 6, kind: input, shape index: {}]
  %s7 = inlined_call_operand.vmem [shape: f32[2,1,32], index: 7, kind: input, shape index: {}]
  %s8 = inlined_call_operand.hbm [shape: f32[2,8,32], index: 8, kind: output, shape index: {}]
  %s9 = sld [smem:[#allocation0]]
  $region81: #{tpu_custom_call.1} parent=0
    _
  %s11 = ssub.s32 1, %s9
  %s12 = scalar_select 0, %s11, %s9
  $region1: #{tpu_custom_call.1} parent=0
    #allocation2 [shape = 'u8[8192]{0}', space=vmem, size = 0x2000, scoped, tag = 'input window, operand 0']
    #allocation3 [shape = 's32[2]{0}', space=sflag, size = 0x8, scoped, tag = 'scoped memory for tpu_custom_call.1']
    #allocation4 [shape = 's32[2]{0}', space=sflag, size = 0x8, scoped, tag = 'scoped memory for tpu_custom_call.1']
    #allocation5 [shape = 'u8[16384]{0}', space=vmem, size = 0x4000, scoped, tag = 'input window, operand 1']
    #allocation6 [shape = 's32[2]{0}', space=sflag, size = 0x8, scoped, tag = 'scoped memory for tpu_custom_call.1']
    #allocation7 [shape = 'u8[16384]{0}', space=vmem, size = 0x4000, scoped, tag = 'input window, operand 2']
    #allocation8 [shape = 'u8[8192]{0}', space=vmem, size = 0x2000, scoped, tag = 'output window, operand 0']
    %13 = vsyncpa [#allocation3], 0
    %s14 = scalar_lea.sflag [#allocation3], 1
    %15 = vsyncpa %s14, 0
    %16 = vsyncpa [#allocation6], 0
    %s17 = scalar_lea.sflag [#allocation6], 1
    %18 = vsyncpa %s17, 0
    %19 = vsyncpa [#allocation4], 0
    %s20 = scalar_lea.sflag [#allocation4], 1
    %21 = vsyncpa %s20, 0
    loop: start=0, step=1, limit=6
    $region2: #{tpu_custom_call.1} parent=1 // loop_pre_header
      _
    $region3: #{tpu_custom_call.1} parent=1 // loop_header
      %s23 = sphi 0, %s27
      %p24 = scmp.ge.s32.totalorder %s23, 6
      %s30 = sphi 0, %s42
      %s31 = sphi 0, %s38
      %s32 = sphi 0, %s30
      %s33 = sphi 0, %s31
      %s34 = sphi 0, %s32
      %s35 = sphi 0, %s33
      %s45 = sphi 0, %s47
      %s48 = sphi 0, %s45
      %s49 = sphi 0, %s48
      %s65 = sphi 0, %s49
      %s71 = sphi 0, %s73
      %s74 = sphi 0, %s71
      %s75 = sphi 0, %s74
      %s91 = sphi 0, %s75
      %s97 = sphi 0, %s99
      %s100 = sphi 0, %s97
      %s101 = sphi 0, %s100
      %s117 = sphi 0, %s101
      %s123 = sphi 0, %s125
      %s126 = sphi 0, %s123
      %s127 = sphi 0, %s126
      %s143 = sphi 0, %s127
      %s149 = sphi 0, %s151
      %s152 = sphi 0, %s149
      %s153 = sphi 0, %s152
      %s169 = sphi 0, %s153
      %s175 = sphi 0, %s177
      %s178 = sphi 0, %s175
      %s179 = sphi 0, %s178
      %s195 = sphi 0, %s179
      %s201 = sphi 0, %s203
      %s204 = sphi 0, %s201
      %s205 = sphi 0, %s204
      %s221 = sphi 0, %s205
      %s227 = sphi 0, %s229
      %s230 = sphi 0, %s227
      %s231 = sphi 0, %s230
      %s247 = sphi 0, %s231
      %s253 = sphi 0, %s255
      %s256 = sphi 0, %s253
      %s257 = sphi 0, %s256
      %s273 = sphi 0, %s257
    $region4: #{tpu_custom_call.1} parent=1 // loop_header_branch
      %26 = sbr.rel (%p24) target = $region8
    $region5: #{tpu_custom_call.1} parent=1 // loop_body
      %s28 = ssub.s32 %s23, 1
      %s29 = ssub.s32 %s23, 2
      %s36 = sadd.s32 1, %s31
      %p37 = scmp.ge.s32.totalorder %s36, 2
      %s38 = scalar_select %p37, 0, %s36
      %s39 = sadd.s32 1, %s30
      %s40 = scalar_select %p37, %s39, %s30
      %p41 = scmp.ge.s32.totalorder %s40, 2
      %s42 = scalar_select %p41, 0, %s40
      %s43 = ssub.s32 %s30, %s42
      %p44 = scmp.eq.s32.totalorder %s43, 0
      %s46 = sadd.s32 %s45, 1
      %s47 = scalar_select %p44, %s45, %s46
      %p50 = pneg %p44
      %p51 = scmp.eq.s32.totalorder %s23, 3
      %p52 = por %p50, %p51
      %p53 = scmp.ne.s32.totalorder %s45, %s48
      %p54 = scmp.eq.s32.totalorder %s23, 0
      %p55 = por %p53, %p54
      %p56 = scmp.ne.s32.totalorder %s45, %s48
      %p57 = scmp.eq.s32.totalorder %s28, 3
      %p58 = por %p56, %p57
      %p59 = scmp.ne.s32.totalorder %s48, %s49
      %p60 = scmp.eq.s32.totalorder %s28, 0
      %p61 = por %p59, %p60
      %p62 = scmp.ne.s32.totalorder %s48, %s49
      %p63 = scmp.eq.s32.totalorder %s29, 3
      %p64 = por %p62, %p63
      %p66 = scmp.ne.s32.totalorder %s49, %s65
      %p67 = scmp.eq.s32.totalorder %s29, 0
      %p68 = por %p66, %p67
      %s69 = ssub.s32 %s31, %s38
      %p70 = scmp.eq.s32.totalorder %s69, 0
      %s72 = sadd.s32 %s71, 1
      %s73 = scalar_select %p70, %s71, %s72
      %p76 = pneg %p70
      %p77 = scmp.eq.s32.totalorder %s23, 3
      %p78 = por %p76, %p77
      %p79 = scmp.ne.s32.totalorder %s71, %s74
      %p80 = scmp.eq.s32.totalorder %s23, 0
      %p81 = por %p79, %p80
      %p82 = scmp.ne.s32.totalorder %s71, %s74
      %p83 = scmp.eq.s32.totalorder %s28, 3
      %p84 = por %p82, %p83
      %p85 = scmp.ne.s32.totalorder %s74, %s75
      %p86 = scmp.eq.s32.totalorder %s28, 0
      %p87 = por %p85, %p86
      %p88 = scmp.ne.s32.totalorder %s74, %s75
      %p89 = scmp.eq.s32.totalorder %s29, 3
      %p90 = por %p88, %p89
      %p92 = scmp.ne.s32.totalorder %s75, %s91
      %p93 = scmp.eq.s32.totalorder %s29, 0
      %p94 = por %p92, %p93
      %s95 = ssub.s32 %s31, %s38
      %p96 = scmp.eq.s32.totalorder %s95, 0
      %s98 = sadd.s32 %s97, 1
      %s99 = scalar_select %p96, %s97, %s98
      %p102 = pneg %p96
      %p103 = scmp.eq.s32.totalorder %s23, 3
      %p104 = por %p102, %p103
      %p105 = scmp.ne.s32.totalorder %s97, %s100
      %p106 = scmp.eq.s32.totalorder %s23, 0
      %p107 = por %p105, %p106
      %p108 = scmp.ne.s32.totalorder %s97, %s100
      %p109 = scmp.eq.s32.totalorder %s28, 3
      %p110 = por %p108, %p109
      %p111 = scmp.ne.s32.totalorder %s100, %s101
      %p112 = scmp.eq.s32.totalorder %s28, 0
      %p113 = por %p111, %p112
      %p114 = scmp.ne.s32.totalorder %s100, %s101
      %p115 = scmp.eq.s32.totalorder %s29, 3
      %p116 = por %p114, %p115
      %p118 = scmp.ne.s32.totalorder %s101, %s117
      %p119 = scmp.eq.s32.totalorder %s29, 0
      %p120 = por %p118, %p119
      %s121 = ssub.s32 %s31, %s38
      %p122 = scmp.eq.s32.totalorder %s121, 0
      %s124 = sadd.s32 %s123, 1
      %s125 = scalar_select %p122, %s123, %s124
      %p128 = pneg %p122
      %p129 = scmp.eq.s32.totalorder %s23, 3
      %p130 = por %p128, %p129
      %p131 = scmp.ne.s32.totalorder %s123, %s126
      %p132 = scmp.eq.s32.totalorder %s23, 0
      %p133 = por %p131, %p132
      %p134 = scmp.ne.s32.totalorder %s123, %s126
      %p135 = scmp.eq.s32.totalorder %s28, 3
      %p136 = por %p134, %p135
      %p137 = scmp.ne.s32.totalorder %s126, %s127
      %p138 = scmp.eq.s32.totalorder %s28, 0
      %p139 = por %p137, %p138
      %p140 = scmp.ne.s32.totalorder %s126, %s127
      %p141 = scmp.eq.s32.totalorder %s29, 3
      %p142 = por %p140, %p141
      %p144 = scmp.ne.s32.totalorder %s127, %s143
      %p145 = scmp.eq.s32.totalorder %s29, 0
      %p146 = por %p144, %p145
      %s147 = ssub.s32 %s31, %s38
      %p148 = scmp.eq.s32.totalorder %s147, 0
      %s150 = sadd.s32 %s149, 1
      %s151 = scalar_select %p148, %s149, %s150
      %p154 = pneg %p148
      %p155 = scmp.eq.s32.totalorder %s23, 3
      %p156 = por %p154, %p155
      %p157 = scmp.ne.s32.totalorder %s149, %s152
      %p158 = scmp.eq.s32.totalorder %s23, 0
      %p159 = por %p157, %p158
      %p160 = scmp.ne.s32.totalorder %s149, %s152
      %p161 = scmp.eq.s32.totalorder %s28, 3
      %p162 = por %p160, %p161
      %p163 = scmp.ne.s32.totalorder %s152, %s153
      %p164 = scmp.eq.s32.totalorder %s28, 0
      %p165 = por %p163, %p164
      %p166 = scmp.ne.s32.totalorder %s152, %s153
      %p167 = scmp.eq.s32.totalorder %s29, 3
      %p168 = por %p166, %p167
      %p170 = scmp.ne.s32.totalorder %s153, %s169
      %p171 = scmp.eq.s32.totalorder %s29, 0
      %p172 = por %p170, %p171
      %s173 = ssub.s32 %s31, %s38
      %p174 = scmp.eq.s32.totalorder %s173, 0
      %s176 = sadd.s32 %s175, 1
      %s177 = scalar_select %p174, %s175, %s176
      %p180 = pneg %p174
      %p181 = scmp.eq.s32.totalorder %s23, 3
      %p182 = por %p180, %p181
      %p183 = scmp.ne.s32.totalorder %s175, %s178
      %p184 = scmp.eq.s32.totalorder %s23, 0
      %p185 = por %p183, %p184
      %p186 = scmp.ne.s32.totalorder %s175, %s178
      %p187 = scmp.eq.s32.totalorder %s28, 3
      %p188 = por %p186, %p187
      %p189 = scmp.ne.s32.totalorder %s178, %s179
      %p190 = scmp.eq.s32.totalorder %s28, 0
      %p191 = por %p189, %p190
      %p192 = scmp.ne.s32.totalorder %s178, %s179
      %p193 = scmp.eq.s32.totalorder %s29, 3
      %p194 = por %p192, %p193
      %p196 = scmp.ne.s32.totalorder %s179, %s195
      %p197 = scmp.eq.s32.totalorder %s29, 0
      %p198 = por %p196, %p197
      %s199 = ssub.s32 %s31, %s38
      %p200 = scmp.eq.s32.totalorder %s199, 0
      %s202 = sadd.s32 %s201, 1
      %s203 = scalar_select %p200, %s201, %s202
      %p206 = pneg %p200
      %p207 = scmp.eq.s32.totalorder %s23, 3
      %p208 = por %p206, %p207
      %p209 = scmp.ne.s32.totalorder %s201, %s204
      %p210 = scmp.eq.s32.totalorder %s23, 0
      %p211 = por %p209, %p210
      %p212 = scmp.ne.s32.totalorder %s201, %s204
      %p213 = scmp.eq.s32.totalorder %s28, 3
      %p214 = por %p212, %p213
      %p215 = scmp.ne.s32.totalorder %s204, %s205
      %p216 = scmp.eq.s32.totalorder %s28, 0
      %p217 = por %p215, %p216
      %p218 = scmp.ne.s32.totalorder %s204, %s205
      %p219 = scmp.eq.s32.totalorder %s29, 3
      %p220 = por %p218, %p219
      %p222 = scmp.ne.s32.totalorder %s205, %s221
      %p223 = scmp.eq.s32.totalorder %s29, 0
      %p224 = por %p222, %p223
      %s225 = ssub.s32 %s31, %s38
      %p226 = scmp.eq.s32.totalorder %s225, 0
      %s228 = sadd.s32 %s227, 1
      %s229 = scalar_select %p226, %s227, %s228
      %p232 = pneg %p226
      %p233 = scmp.eq.s32.totalorder %s23, 3
      %p234 = por %p232, %p233
      %p235 = scmp.ne.s32.totalorder %s227, %s230
      %p236 = scmp.eq.s32.totalorder %s23, 0
      %p237 = por %p235, %p236
      %p238 = scmp.ne.s32.totalorder %s227, %s230
      %p239 = scmp.eq.s32.totalorder %s28, 3
      %p240 = por %p238, %p239
      %p241 = scmp.ne.s32.totalorder %s230, %s231
      %p242 = scmp.eq.s32.totalorder %s28, 0
      %p243 = por %p241, %p242
      %p244 = scmp.ne.s32.totalorder %s230, %s231
      %p245 = scmp.eq.s32.totalorder %s29, 3
      %p246 = por %p244, %p245
      %p248 = scmp.ne.s32.totalorder %s231, %s247
      %p249 = scmp.eq.s32.totalorder %s29, 0
      %p250 = por %p248, %p249
      %s251 = ssub.s32 %s30, %s42
      %p252 = scmp.eq.s32.totalorder %s251, 0
      %s254 = sadd.s32 %s253, 1
      %s255 = scalar_select %p252, %s253, %s254
      %p258 = pneg %p252
      %p259 = scmp.eq.s32.totalorder %s23, 3
      %p260 = por %p258, %p259
      %p261 = scmp.ne.s32.totalorder %s253, %s256
      %p262 = scmp.eq.s32.totalorder %s23, 0
      %p263 = por %p261, %p262
      %p264 = scmp.ne.s32.totalorder %s253, %s256
      %p265 = scmp.eq.s32.totalorder %s28, 3
      %p266 = por %p264, %p265
      %p267 = scmp.ne.s32.totalorder %s256, %s257
      %p268 = scmp.eq.s32.totalorder %s28, 0
      %p269 = por %p267, %p268
      %p270 = scmp.ne.s32.totalorder %s256, %s257
      %p271 = scmp.eq.s32.totalorder %s29, 3
      %p272 = por %p270, %p271
      %p274 = scmp.ne.s32.totalorder %s257, %s273
      %p275 = scmp.eq.s32.totalorder %s29, 0
      %p276 = por %p274, %p275
      %p277 = scmp.le.s32.totalorder 1, %s23
      %p278 = scmp.lt.s32.totalorder %s23, 5
      %p279 = pnand %p277, %p278
      %p280 = pneg %p279
      // Predicated region
      $region9: #{tpu_custom_call.1} parent=5 // pred_check
        _
      $region10: #{tpu_custom_call.1} parent=5 // pred_check_branch
        %282 = sbr.rel (%p279) target = $region12
      $region11: #{tpu_custom_call.1} parent=5 // pred_region
        %s283 = ssub.s32 %s23, 1
      $region12: #{tpu_custom_call.1} parent=5 // pred_fallthru
        _
      %p284 = scmp.lt.s32.totalorder %s23, 4
      // Predicated region
      $region13: #{tpu_custom_call.1} parent=5 // pred_check
        %p285 = pneg %p284
      $region14: #{tpu_custom_call.1} parent=5 // pred_check_branch
        %287 = sbr.rel (%p285) target = $region16
      $region15: #{tpu_custom_call.1} parent=5 // pred_region
        // Predicated region
        $region17: #{tpu_custom_call.1} parent=15 // pred_check
          %p288 = pneg %p55
        $region18: #{tpu_custom_call.1} parent=15 // pred_check_branch
          %290 = sbr.rel (%p288) target = $region20
        $region19: #{tpu_custom_call.1} parent=15 // pred_region
          %s291 = sand.u32 %s45, 1
          %s292 = scalar_lea.sflag [#allocation3], %s291
          %s293 = sand.u32 %s45, 1
          %s294 = smul.addr %s293, 8
          %s295 = scalar_lea.vmem [#allocation2], %s294
          %s297 = ssub.s32 128, 128
          %298 = vsyncadd %s292, %s297
          %s299 = smul.addr %s30, 128
          %s300 = scalar_lea.hbm %s0, %s299
          %s302 = sshll.u32 %s295, 4
          %s303 = int_to_ptr.vmem [resolvable:$true] %s302
          %305 = dma.hbm_to_vmem [thread:$0]  %s300, 128, %s303, %s292
        $region20: #{tpu_custom_call.1} parent=15 // pred_fallthru
          _
        // Predicated region
        $region21: #{tpu_custom_call.1} parent=15 // pred_check
          %p306 = pneg %p81
        $region22: #{tpu_custom_call.1} parent=15 // pred_check_branch
          %308 = sbr.rel (%p306) target = $region24
        $region23: #{tpu_custom_call.1} parent=15 // pred_region
          %s309 = sand.u32 %s23, 1
          %s310 = scalar_lea.sflag [#allocation6], %s309
          %s311 = sand.u32 %s71, 1
          %s312 = smul.addr %s311, 16
          %s313 = scalar_lea.vmem [#allocation5], %s312
          %s315 = ssub.s32 256, 256
          %316 = vsyncadd %s310, %s315
          %s317 = smul.addr %s31, 4
          %s318 = smul.addr %s317, 64
          %s319 = scalar_lea.hbm %s1, %s318
          %s320 = sshll.u32 %s313, 4
          %s321 = int_to_ptr.vmem [resolvable:$true] %s320
          %326 = dma.hbm_to_vmem [thread:$0]  %s319, 256, %s321, %s310, 64, 64, 4
        $region24: #{tpu_custom_call.1} parent=15 // pred_fallthru
          _
        // Predicated region
        $region25: #{tpu_custom_call.1} parent=15 // pred_check
          %p327 = pneg %p107
        $region26: #{tpu_custom_call.1} parent=15 // pred_check_branch
          %329 = sbr.rel (%p327) target = $region28
        $region27: #{tpu_custom_call.1} parent=15 // pred_region
          %s330 = sand.u32 %s23, 1
          %s331 = scalar_lea.sflag [#allocation6], %s330
          %s332 = sand.u32 %s97, 1
          %s333 = smul.addr %s332, 16
          %s334 = scalar_lea.vmem [#allocation7], %s333
          %s336 = ssub.s32 256, 256
          %337 = vsyncadd %s331, %s336
          %s338 = smul.addr %s31, 4
          %s339 = smul.addr %s338, 64
          %s340 = scalar_lea.hbm %s2, %s339
          %s341 = sshll.u32 %s334, 4
          %s342 = int_to_ptr.vmem [resolvable:$true] %s341
          %347 = dma.hbm_to_vmem [thread:$0]  %s340, 256, %s342, %s331, 64, 64, 4
        $region28: #{tpu_custom_call.1} parent=15 // pred_fallthru
          _
        // Predicated region
        $region29: #{tpu_custom_call.1} parent=15 // pred_check
          %p348 = pneg %p133
        $region30: #{tpu_custom_call.1} parent=15 // pred_check_branch
          %350 = sbr.rel (%p348) target = $region32
        $region31: #{tpu_custom_call.1} parent=15 // pred_region
          %p351 = scmp.lt.s32.totalorder %s31, 1
          %s352 = scalar_select %p351, %s31, 1
          %s353 = scalar_lea.vmem %s3, %s352
        $region32: #{tpu_custom_call.1} parent=15 // pred_fallthru
          _
        // Predicated region
        $region33: #{tpu_custom_call.1} parent=15 // pred_check
          %p354 = pneg %p159
        $region34: #{tpu_custom_call.1} parent=15 // pred_check_branch
          %356 = sbr.rel (%p354) target = $region36
        $region35: #{tpu_custom_call.1} parent=15 // pred_region
          %p357 = scmp.lt.s32.totalorder %s31, 1
          %s358 = scalar_select %p357, %s31, 1
          %s359 = scalar_lea.vmem %s4, %s358
        $region36: #{tpu_custom_call.1} parent=15 // pred_fallthru
          _
        // Predicated region
        $region37: #{tpu_custom_call.1} parent=15 // pred_check
          %p360 = pneg %p185
        $region38: #{tpu_custom_call.1} parent=15 // pred_check_branch
          %362 = sbr.rel (%p360) target = $region40
        $region39: #{tpu_custom_call.1} parent=15 // pred_region
          %p363 = scmp.lt.s32.totalorder %s31, 1
          %s364 = scalar_select %p363, %s31, 1
          %s365 = scalar_lea.vmem %s5, %s364
        $region40: #{tpu_custom_call.1} parent=15 // pred_fallthru
          _
        // Predicated region
        $region41: #{tpu_custom_call.1} parent=15 // pred_check
          %p366 = pneg %p211
        $region42: #{tpu_custom_call.1} parent=15 // pred_check_branch
          %368 = sbr.rel (%p366) target = $region44
        $region43: #{tpu_custom_call.1} parent=15 // pred_region
          %p369 = scmp.lt.s32.totalorder %s31, 1
          %s370 = scalar_select %p369, %s31, 1
          %s371 = scalar_lea.vmem %s6, %s370
        $region44: #{tpu_custom_call.1} parent=15 // pred_fallthru
          _
        // Predicated region
        $region45: #{tpu_custom_call.1} parent=15 // pred_check
          %p372 = pneg %p237
        $region46: #{tpu_custom_call.1} parent=15 // pred_check_branch
          %374 = sbr.rel (%p372) target = $region48
        $region47: #{tpu_custom_call.1} parent=15 // pred_region
          %p375 = scmp.lt.s32.totalorder %s31, 1
          %s376 = scalar_select %p375, %s31, 1
          %s377 = scalar_lea.vmem %s7, %s376
        $region48: #{tpu_custom_call.1} parent=15 // pred_fallthru
          _
      $region16: #{tpu_custom_call.1} parent=5 // pred_fallthru
        _
      %p378 = scmp.le.s32.totalorder 1, %s23
      %p379 = scmp.lt.s32.totalorder %s23, 5
      %p380 = pnand %p378, %p379
      %p381 = pneg %p380
      // Predicated region
      $region49: #{tpu_custom_call.1} parent=5 // pred_check
        _
      $region50: #{tpu_custom_call.1} parent=5 // pred_check_branch
        %383 = sbr.rel (%p380) target = $region52
      $region51: #{tpu_custom_call.1} parent=5 // pred_region
        %s384 = ssub.s32 %s23, 1
        %s385 = sand.u32 %s48, 1
        %s386 = scalar_lea.sflag [#allocation3], %s385
        %s387 = sand.u32 %s48, 1
        %s388 = smul.addr %s387, 8
        %s389 = scalar_lea.vmem [#allocation2], %s388
        // Predicated region
        $region53: #{tpu_custom_call.1} parent=51 // pred_check
          %p390 = pneg %p61
        $region54: #{tpu_custom_call.1} parent=51 // pred_check_branch
          %392 = sbr.rel (%p390) target = $region56
        $region55: #{tpu_custom_call.1} parent=51 // pred_region
          %393 = dma.done %s386, 128
        $region56: #{tpu_custom_call.1} parent=51 // pred_fallthru
          _
        %s394 = sand.u32 %s28, 1
        %s395 = scalar_lea.sflag [#allocation6], %s394
        %s396 = sand.u32 %s74, 1
        %s397 = smul.addr %s396, 16
        %s398 = scalar_lea.vmem [#allocation5], %s397
        // Predicated region
        $region57: #{tpu_custom_call.1} parent=51 // pred_check
          %p399 = pneg %p87
        $region58: #{tpu_custom_call.1} parent=51 // pred_check_branch
          %401 = sbr.rel (%p399) target = $region60
        $region59: #{tpu_custom_call.1} parent=51 // pred_region
          %402 = dma.done %s395, 256
        $region60: #{tpu_custom_call.1} parent=51 // pred_fallthru
          _
        %s403 = sand.u32 %s28, 1
        %s404 = scalar_lea.sflag [#allocation6], %s403
        %s405 = sand.u32 %s100, 1
        %s406 = smul.addr %s405, 16
        %s407 = scalar_lea.vmem [#allocation7], %s406
        // Predicated region
        $region61: #{tpu_custom_call.1} parent=51 // pred_check
          %p408 = pneg %p113
        $region62: #{tpu_custom_call.1} parent=51 // pred_check_branch
          %410 = sbr.rel (%p408) target = $region64
        $region63: #{tpu_custom_call.1} parent=51 // pred_region
          %411 = dma.done %s404, 256
        $region64: #{tpu_custom_call.1} parent=51 // pred_fallthru
          _
        %s412 = sand.u32 %s48, 1
        %s413 = scalar_lea.sflag [#allocation3], %s412
        %s414 = sand.u32 %s48, 1
        %s415 = smul.addr %s414, 8
        %s416 = scalar_lea.vmem [#allocation2], %s415
        %p417 = pneg %p61
        %p418 = pneg %p58
        %s419 = sand.u32 %s28, 1
        %s420 = scalar_lea.sflag [#allocation6], %s419
        %s421 = sand.u32 %s74, 1
        %s422 = smul.addr %s421, 16
        %s423 = scalar_lea.vmem [#allocation5], %s422
        %p424 = pneg %p87
        %p425 = pneg %p84
        %s426 = sand.u32 %s28, 1
        %s427 = scalar_lea.sflag [#allocation6], %s426
        %s428 = sand.u32 %s100, 1
        %s429 = smul.addr %s428, 16
        %s430 = scalar_lea.vmem [#allocation7], %s429
        %p431 = pneg %p113
        %p432 = pneg %p110
        %p433 = scmp.lt.s32.totalorder %s33, 1
        %s434 = scalar_select %p433, %s33, 1
        %s435 = scalar_lea.vmem %s3, %s434
        %p436 = pneg %p139
        %p437 = pneg %p136
        %p438 = scmp.lt.s32.totalorder %s33, 1
        %s439 = scalar_select %p438, %s33, 1
        %s440 = scalar_lea.vmem %s4, %s439
        %p441 = pneg %p165
        %p442 = pneg %p162
        %p443 = scmp.lt.s32.totalorder %s33, 1
        %s444 = scalar_select %p443, %s33, 1
        %s445 = scalar_lea.vmem %s5, %s444
        %p446 = pneg %p191
        %p447 = pneg %p188
        %p448 = scmp.lt.s32.totalorder %s33, 1
        %s449 = scalar_select %p448, %s33, 1
        %s450 = scalar_lea.vmem %s6, %s449
        %p451 = pneg %p217
        %p452 = pneg %p214
        %p453 = scmp.lt.s32.totalorder %s33, 1
        %s454 = scalar_select %p453, %s33, 1
        %s455 = scalar_lea.vmem %s7, %s454
        %p456 = pneg %p243
        %p457 = pneg %p240
        %p458 = pneg %p269
        %p459 = pneg %p266
        %s460 = sand.u32 %s256, 1
        %s461 = scalar_lea.sflag [#allocation4], %s460
        %s462 = sand.u32 %s256, 1
        %s463 = smul.addr %s462, 8
        %s464 = scalar_lea.vmem [#allocation8], %s463
        %p465 = scmp.lt.s32.totalorder %s33, 1
        %s466 = scalar_select %p465, %s33, 1
        %s467 = scalar_lea.vmem %s3, %s466
        %p468 = scmp.lt.s32.totalorder %s33, 1
        %s469 = scalar_select %p468, %s33, 1
        %s470 = scalar_lea.vmem %s4, %s469
        %p471 = scmp.lt.s32.totalorder %s33, 1
        %s472 = scalar_select %p471, %s33, 1
        %s473 = scalar_lea.vmem %s5, %s472
        %p474 = scmp.lt.s32.totalorder %s33, 1
        %s475 = scalar_select %p474, %s33, 1
        %s476 = scalar_lea.vmem %s6, %s475
        %p477 = scmp.lt.s32.totalorder %s33, 1
        %s478 = scalar_select %p477, %s33, 1
        %s479 = scalar_lea.vmem %s7, %s478
        %p481 = scmp.eq.s32.totalorder %s33, 0
        // Predicated region
        $region65: #{tpu_custom_call.1} parent=51 // pred_check
          %p482 = pneg %p481
        $region66: #{tpu_custom_call.1} parent=51 // pred_check_branch
          %484 = sbr.rel (%p482) target = $region68
        $region67: #{tpu_custom_call.1} parent=51 // pred_region
          %v485 = vld [vmem:[%s389] sm:$0xff]
          %vm486 = vcmask 261120
          %487 = vst.msk [vmem:[%s464] sm:$0xff] %vm486, %v485
        $region68: #{tpu_custom_call.1} parent=51 // pred_fallthru
          _
        %v488 = vld [vmem:[%s464] sm:$0xff]
        %v489 = vld [vmem:[%s470] sm:$0x1]
        %v490 = vld [vmem:[%s473] sm:$0x1]
        %vm491 = vcmask 261120
        %v492 = vsel %vm491, %v488, 0.0
        %493 = vadd.xlane.f32.xlu0 %v492
        %v494 = vpop.xlane.xlu0 %493
        %v495 = vrcp.pop 32.0
        %v496 = vmul.f32 %v494, %v495
        %v497 = vsub.f32 %v488, %v496
        %v498 = vmul.f32 %v497, %v497
        %v499 = vsel %vm491, %v498, 0.0
        %500 = vadd.xlane.f32.xlu0 %v499
        %v501 = vpop.xlane.xlu0 %500
        %v502 = vmul.f32 %v501, %v495
        %v504 = vlaneseq
        %v505 = vshrl.u32 %v504, 7
        %v506 = vsub.s32 0, %v505
        %v507 = vrot.slane %v489, %v506
        %v509 = vmul.f32 %v507, %v497
        %v510 = vadd.f32 %v502, 1e-05
        %v511 = vrsqrt.pop %v510
        %v512 = vmul.f32 %v510, %v511
        %vm513 = vcmp.eq.f32.partialorder %v510, inf
        %v514 = vsel %vm513, %v510, %v512
        %vm515 = vcmp.eq.f32.partialorder %v510, 0.0
        %v516 = vand.u32 %v510, 2147483648
        %v517 = vsel %vm515, %v516, %v514
        %v518 = vrcp.pop %v517
        %v519 = vmul.f32 %v509, %v518
        %v521 = vlaneseq
        %v522 = vshrl.u32 %v521, 7
        %v523 = vsub.s32 0, %v522
        %v524 = vrot.slane %v490, %v523
        %v526 = vadd.f32 %v519, %v524
        %v527 = vpack.c.bf16 %v526, %v526
        %v528 = vld [vmem:[%s398] sm:$0xf]
        %v529 = vld [vmem:[%s398 + $0x4] sm:$0xf]
        %v530 = vld [vmem:[%s398 + $0x8] sm:$0xf]
        %v531 = vld [vmem:[%s398 + $0xc] sm:$0xf]
        %v536 = vunpack.c.l.b16 %v528
        %v537 = vunpack.c.l.b16 %v529
        %v538 = vunpack.c.l.b16 %v530
        %v539 = vunpack.c.l.b16 %v531
        %v540 = vpack.c.b16 %v537, %v536
        %v541 = vpack.c.b16 %v539, %v538
        %v545 = vsel %vm491, %v527, 0
        %547 = vmatprep.subr.bf16.mxu0 0
        %548 = vmatpush1.bf16.msra.mxu0 0
        %549 = vmatprep.subr.bf16.mxu0 0
        %550 = vmatpush1.bf16.msra.mxu0 0
        %551 = vmatprep.subr.bf16.mxu0 0
        %552 = vmatpush1.bf16.msra.mxu0 0
        %553 = vmatprep.subr.bf16.mxu0 0
        %554 = vmatpush1.bf16.msra.mxu0 0
        %555 = vmatprep.subr.bf16.mxu0 0
        %556 = vmatpush1.bf16.msra.mxu0 0
        %557 = vmatprep.subr.bf16.mxu0 0
        %558 = vmatpush1.bf16.msra.mxu0 0
        %559 = vmatprep.subr.bf16.mxu0 0
        %560 = vmatpush1.bf16.msra.mxu0 %v541
        %561 = vmatprep.subr.bf16.mxu0 0
        %562 = vmatpush1.bf16.msra.mxu0 %v540
        %563 = vmatprep.subr.bf16.mxu0 0
        %564 = vmatpush2.bf16.msra.mxu0 0
        %565 = vmatprep.subr.bf16.mxu0 0
        %566 = vmatpush2.bf16.msra.mxu0 0
        %567 = vmatprep.subr.bf16.mxu0 0
        %568 = vmatpush2.bf16.msra.mxu0 0
        %569 = vmatprep.subr.bf16.mxu0 0
        %570 = vmatpush2.bf16.msra.mxu0 0
        %571 = vmatprep.subr.bf16.mxu0 0
        %572 = vmatpush2.bf16.msra.mxu0 0
        %573 = vmatprep.subr.bf16.mxu0 0
        %574 = vmatpush2.bf16.msra.mxu0 0
        %575 = vmatprep.subr.bf16.mxu0 0
        %576 = vmatpush2.bf16.msra.mxu0 0
        %577 = vmatprep.subr.bf16.mxu0 0
        %578 = vmatpush2.bf16.msra.mxu0 0
        %579 = vmatprep.mubr.bf16.mxu0 0
        %580 = vmatmul.mubr.bf16.gmra.mxu0 %v545
        %v581 = vpop.f32.mrf.mxu0
        %v582 = vadd.f32 0.0, %v581
        %v583 = vpop.f32.mrf.mxu0
        %v584 = vpop.f32.mrf.mxu0
        %v585 = vpop.f32.mrf.mxu0
        %586 = vdwg.mxu0
        %588 = vrot.lane.b32.xlu0 %v582, 120
        %v589 = vpop.permute.xlu0 %588
        %591 = vrot.lane.b32.xlu0 %v582, 112
        %v592 = vpop.permute.xlu0 %591
        %594 = vrot.lane.b32.xlu0 %v582, 104
        %v595 = vpop.permute.xlu0 %594
        %v597 = vpack.c.bf16 %v582, %v582
        %v598 = vpack.c.bf16 %v589, %v589
        %v599 = vpack.c.bf16 %v592, %v592
        %v600 = vpack.c.bf16 %v595, %v595
        %v601 = vlaneseq
        %v602 = vshrl.u32 %v601, 7
        %v603 = vlaneseq
        %v604 = vand.u32 %v603, 127
        %vm605 = vcmp.gt.s32.totalorder %v604, %v602
        %607 = vrot.lane.b32.xlu0 %v597, 96
        %v608 = vpop.permute.xlu0 %607
        %vm609 = vcmask 64512
        %v611 = vsel %vm609, %v597, 0
        %v614 = vsel %vm609, %v608, 0
        %616 = vmatprep.subr.bf16.mxu0 0
        %617 = vmatpush1.bf16.xpose.msra.mxu0 0
        %618 = vmatprep.subr.bf16.mxu0 0
        %619 = vmatpush1.bf16.xpose.msra.mxu0 0
        %620 = vmatprep.subr.bf16.mxu0 0
        %621 = vmatpush1.bf16.xpose.msra.mxu0 0
        %622 = vmatprep.subr.bf16.mxu0 0
        %623 = vmatpush1.bf16.xpose.msra.mxu0 0
        %624 = vmatprep.subr.bf16.mxu0 0
        %625 = vmatpush1.bf16.xpose.msra.mxu0 0
        %626 = vmatprep.subr.bf16.mxu0 0
        %627 = vmatpush1.bf16.xpose.msra.mxu0 0
        %628 = vmatprep.subr.bf16.mxu0 0
        %629 = vmatpush1.bf16.xpose.msra.mxu0 0
        %630 = vmatprep.subr.bf16.mxu0 0
        %631 = vmatpush1.bf16.xpose.msra.mxu0 %v614
        %632 = vmatprep.subr.bf16.mxu0 0
        %633 = vmatpush2.bf16.xpose.msra.mxu0 0
        %634 = vmatprep.subr.bf16.mxu0 0
        %635 = vmatpush2.bf16.xpose.msra.mxu0 0
        %636 = vmatprep.subr.bf16.mxu0 0
        %637 = vmatpush2.bf16.xpose.msra.mxu0 0
        %638 = vmatprep.subr.bf16.mxu0 0
        %639 = vmatpush2.bf16.xpose.msra.mxu0 0
        %640 = vmatprep.subr.bf16.mxu0 0
        %641 = vmatpush2.bf16.xpose.msra.mxu0 0
        %642 = vmatprep.subr.bf16.mxu0 0
        %643 = vmatpush2.bf16.xpose.msra.mxu0 0
        %644 = vmatprep.subr.bf16.mxu0 0
        %645 = vmatpush2.bf16.xpose.msra.mxu0 0
        %646 = vmatprep.subr.bf16.mxu0 0
        %647 = vmatpush2.bf16.xpose.msra.mxu0 0
        %648 = vmatprep.mubr.bf16.mxu0 0
        %649 = vmatmul.mubr.bf16.gmra.mxu0 %v611
        %v650 = vpop.f32.mrf.mxu0
        %v651 = vadd.f32 0.0, %v650
        %v652 = vpop.f32.mrf.mxu0
        %v653 = vpop.f32.mrf.mxu0
        %v654 = vpop.f32.mrf.mxu0
        %655 = vdwg.mxu0
        %657 = vrot.lane.b32.xlu0 %v598, 96
        %v658 = vpop.permute.xlu0 %657
        %v660 = vsel %vm609, %v598, 0
        %v663 = vsel %vm609, %v658, 0
        %665 = vmatprep.subr.bf16.mxu0 0
        %666 = vmatpush1.bf16.xpose.msra.mxu0 0
        %667 = vmatprep.subr.bf16.mxu0 0
        %668 = vmatpush1.bf16.xpose.msra.mxu0 0
        %669 = vmatprep.subr.bf16.mxu0 0
        %670 = vmatpush1.bf16.xpose.msra.mxu0 0
        %671 = vmatprep.subr.bf16.mxu0 0
        %672 = vmatpush1.bf16.xpose.msra.mxu0 0
        %673 = vmatprep.subr.bf16.mxu0 0
        %674 = vmatpush1.bf16.xpose.msra.mxu0 0
        %675 = vmatprep.subr.bf16.mxu0 0
        %676 = vmatpush1.bf16.xpose.msra.mxu0 0
        %677 = vmatprep.subr.bf16.mxu0 0
        %678 = vmatpush1.bf16.xpose.msra.mxu0 0
        %679 = vmatprep.subr.bf16.mxu0 0
        %680 = vmatpush1.bf16.xpose.msra.mxu0 %v663
        %681 = vmatprep.subr.bf16.mxu0 0
        %682 = vmatpush2.bf16.xpose.msra.mxu0 0
        %683 = vmatprep.subr.bf16.mxu0 0
        %684 = vmatpush2.bf16.xpose.msra.mxu0 0
        %685 = vmatprep.subr.bf16.mxu0 0
        %686 = vmatpush2.bf16.xpose.msra.mxu0 0
        %687 = vmatprep.subr.bf16.mxu0 0
        %688 = vmatpush2.bf16.xpose.msra.mxu0 0
        %689 = vmatprep.subr.bf16.mxu0 0
        %690 = vmatpush2.bf16.xpose.msra.mxu0 0
        %691 = vmatprep.subr.bf16.mxu0 0
        %692 = vmatpush2.bf16.xpose.msra.mxu0 0
        %693 = vmatprep.subr.bf16.mxu0 0
        %694 = vmatpush2.bf16.xpose.msra.mxu0 0
        %695 = vmatprep.subr.bf16.mxu0 0
        %696 = vmatpush2.bf16.xpose.msra.mxu0 0
        %697 = vmatprep.mubr.bf16.mxu0 0
        %698 = vmatmul.mubr.bf16.gmra.mxu0 %v660
        %v699 = vpop.f32.mrf.mxu0
        %v700 = vadd.f32 0.0, %v699
        %v701 = vpop.f32.mrf.mxu0
        %v702 = vpop.f32.mrf.mxu0
        %v703 = vpop.f32.mrf.mxu0
        %704 = vdwg.mxu0
        %706 = vrot.lane.b32.xlu0 %v599, 96
        %v707 = vpop.permute.xlu0 %706
        %v709 = vsel %vm609, %v599, 0
        %v712 = vsel %vm609, %v707, 0
        %714 = vmatprep.subr.bf16.mxu0 0
        %715 = vmatpush1.bf16.xpose.msra.mxu0 0
        %716 = vmatprep.subr.bf16.mxu0 0
        %717 = vmatpush1.bf16.xpose.msra.mxu0 0
        %718 = vmatprep.subr.bf16.mxu0 0
        %719 = vmatpush1.bf16.xpose.msra.mxu0 0
        %720 = vmatprep.subr.bf16.mxu0 0
        %721 = vmatpush1.bf16.xpose.msra.mxu0 0
        %722 = vmatprep.subr.bf16.mxu0 0
        %723 = vmatpush1.bf16.xpose.msra.mxu0 0
        %724 = vmatprep.subr.bf16.mxu0 0
        %725 = vmatpush1.bf16.xpose.msra.mxu0 0
        %726 = vmatprep.subr.bf16.mxu0 0
        %727 = vmatpush1.bf16.xpose.msra.mxu0 0
        %728 = vmatprep.subr.bf16.mxu0 0
        %729 = vmatpush1.bf16.xpose.msra.mxu0 %v712
        %730 = vmatprep.subr.bf16.mxu0 0
        %731 = vmatpush2.bf16.xpose.msra.mxu0 0
        %732 = vmatprep.subr.bf16.mxu0 0
        %733 = vmatpush2.bf16.xpose.msra.mxu0 0
        %734 = vmatprep.subr.bf16.mxu0 0
        %735 = vmatpush2.bf16.xpose.msra.mxu0 0
        %736 = vmatprep.subr.bf16.mxu0 0
        %737 = vmatpush2.bf16.xpose.msra.mxu0 0
        %738 = vmatprep.subr.bf16.mxu0 0
        %739 = vmatpush2.bf16.xpose.msra.mxu0 0
        %740 = vmatprep.subr.bf16.mxu0 0
        %741 = vmatpush2.bf16.xpose.msra.mxu0 0
        %742 = vmatprep.subr.bf16.mxu0 0
        %743 = vmatpush2.bf16.xpose.msra.mxu0 0
        %744 = vmatprep.subr.bf16.mxu0 0
        %745 = vmatpush2.bf16.xpose.msra.mxu0 0
        %746 = vmatprep.mubr.bf16.mxu0 0
        %747 = vmatmul.mubr.bf16.gmra.mxu0 %v709
        %v748 = vpop.f32.mrf.mxu0
        %v749 = vadd.f32 0.0, %v748
        %v750 = vpop.f32.mrf.mxu0
        %v751 = vpop.f32.mrf.mxu0
        %v752 = vpop.f32.mrf.mxu0
        %753 = vdwg.mxu0
        %755 = vrot.lane.b32.xlu0 %v600, 96
        %v756 = vpop.permute.xlu0 %755
        %v758 = vsel %vm609, %v600, 0
        %v761 = vsel %vm609, %v756, 0
        %763 = vmatprep.subr.bf16.mxu0 0
        %764 = vmatpush1.bf16.xpose.msra.mxu0 0
        %765 = vmatprep.subr.bf16.mxu0 0
        %766 = vmatpush1.bf16.xpose.msra.mxu0 0
        %767 = vmatprep.subr.bf16.mxu0 0
        %768 = vmatpush1.bf16.xpose.msra.mxu0 0
        %769 = vmatprep.subr.bf16.mxu0 0
        %770 = vmatpush1.bf16.xpose.msra.mxu0 0
        %771 = vmatprep.subr.bf16.mxu0 0
        %772 = vmatpush1.bf16.xpose.msra.mxu0 0
        %773 = vmatprep.subr.bf16.mxu0 0
        %774 = vmatpush1.bf16.xpose.msra.mxu0 0
        %775 = vmatprep.subr.bf16.mxu0 0
        %776 = vmatpush1.bf16.xpose.msra.mxu0 0
        %777 = vmatprep.subr.bf16.mxu0 0
        %778 = vmatpush1.bf16.xpose.msra.mxu0 %v761
        %779 = vmatprep.subr.bf16.mxu0 0
        %780 = vmatpush2.bf16.xpose.msra.mxu0 0
        %781 = vmatprep.subr.bf16.mxu0 0
        %782 = vmatpush2.bf16.xpose.msra.mxu0 0
        %783 = vmatprep.subr.bf16.mxu0 0
        %784 = vmatpush2.bf16.xpose.msra.mxu0 0
        %785 = vmatprep.subr.bf16.mxu0 0
        %786 = vmatpush2.bf16.xpose.msra.mxu0 0
        %787 = vmatprep.subr.bf16.mxu0 0
        %788 = vmatpush2.bf16.xpose.msra.mxu0 0
        %789 = vmatprep.subr.bf16.mxu0 0
        %790 = vmatpush2.bf16.xpose.msra.mxu0 0
        %791 = vmatprep.subr.bf16.mxu0 0
        %792 = vmatpush2.bf16.xpose.msra.mxu0 0
        %793 = vmatprep.subr.bf16.mxu0 0
        %794 = vmatpush2.bf16.xpose.msra.mxu0 0
        %795 = vmatprep.mubr.bf16.mxu0 0
        %796 = vmatmul.mubr.bf16.gmra.mxu0 %v758
        %v797 = vpop.f32.mrf.mxu0
        %v798 = vadd.f32 0.0, %v797
        %v799 = vpop.f32.mrf.mxu0
        %v800 = vpop.f32.mrf.mxu0
        %v801 = vpop.f32.mrf.mxu0
        %802 = vdwg.mxu0
        %v803 = vmul.f32 %v651, 0.35355338
        %v804 = vmul.f32 %v700, 0.35355338
        %v805 = vmul.f32 %v749, 0.35355338
        %v806 = vmul.f32 %v798, 0.35355338
        %v807 = vsel %vm605, 1, 0
        %vm808 = vcmp.eq.s32.totalorder %v807, 1
        %v809 = vsel %vm808, -1.7014117e+38, %v803
        %v810 = vsel %vm808, -1.7014117e+38, %v804
        %v811 = vsel %vm808, -1.7014117e+38, %v805
        %v812 = vsel %vm808, -1.7014117e+38, %v806
        %v813 = vsel %vm609, %v809, -inf
        %814 = vmax.xlane.f32.xlu0 %v813
        %v815 = vpop.xlane.xlu0 %814
        %v816 = vsel %vm609, %v810, -inf
        %817 = vmax.xlane.f32.xlu0 %v816
        %v818 = vpop.xlane.xlu0 %817
        %v819 = vsel %vm609, %v811, -inf
        %820 = vmax.xlane.f32.xlu0 %v819
        %v821 = vpop.xlane.xlu0 %820
        %v822 = vsel %vm609, %v812, -inf
        %823 = vmax.xlane.f32.xlu0 %v822
        %v824 = vpop.xlane.xlu0 %823
        %v825 = vsub.f32 %v809, %v815
        %v826 = vsub.f32 %v810, %v818
        %v827 = vsub.f32 %v811, %v821
        %v828 = vsub.f32 %v812, %v824
        %v829 = vmul.f32 %v825, 1.442695
        %v830 = vpow.pop %v829
        %v831 = vmul.f32 %v826, 1.442695
        %v832 = vpow.pop %v831
        %v833 = vmul.f32 %v827, 1.442695
        %v834 = vpow.pop %v833
        %v835 = vmul.f32 %v828, 1.442695
        %v836 = vpow.pop %v835
        %v837 = vsel %vm609, %v830, 0.0
        %838 = vadd.xlane.f32.xlu0 %v837
        %v839 = vpop.xlane.xlu0 %838
        %v840 = vsel %vm609, %v832, 0.0
        %841 = vadd.xlane.f32.xlu0 %v840
        %v842 = vpop.xlane.xlu0 %841
        %v843 = vsel %vm609, %v834, 0.0
        %844 = vadd.xlane.f32.xlu0 %v843
        %v845 = vpop.xlane.xlu0 %844
        %v846 = vsel %vm609, %v836, 0.0
        %847 = vadd.xlane.f32.xlu0 %v846
        %v848 = vpop.xlane.xlu0 %847
        %v849 = vrcp.pop %v839
        %v850 = vrcp.pop %v842
        %v851 = vrcp.pop %v845
        %v852 = vrcp.pop %v848
        %v853 = vmul.f32 %v830, %v849
        %v854 = vmul.f32 %v832, %v850
        %v855 = vmul.f32 %v834, %v851
        %v856 = vmul.f32 %v836, %v852
        %v857 = vpack.c.bf16 %v853, %v853
        %v858 = vpack.c.bf16 %v854, %v854
        %v859 = vpack.c.bf16 %v855, %v855
        %v860 = vpack.c.bf16 %v856, %v856
        %861 = vrot.lane.b32.xlu0 %v597, 64
        %v862 = vpop.permute.xlu0 %861
        %v864 = vsel %vm609, %v857, 0
        %vm866 = vcmask 1043456
        %v868 = vsel %vm866, %v862, 0
        %870 = vmatprep.subr.bf16.mxu0 0
        %871 = vmatpush1.bf16.msra.mxu0 0
        %872 = vmatprep.subr.bf16.mxu0 0
        %873 = vmatpush1.bf16.msra.mxu0 0
        %874 = vmatprep.subr.bf16.mxu0 0
        %875 = vmatpush1.bf16.msra.mxu0 0
        %876 = vmatprep.subr.bf16.mxu0 0
        %877 = vmatpush1.bf16.msra.mxu0 0
        %878 = vmatprep.subr.bf16.mxu0 0
        %879 = vmatpush1.bf16.msra.mxu0 0
        %880 = vmatprep.subr.bf16.mxu0 0
        %881 = vmatpush1.bf16.msra.mxu0 0
        %882 = vmatprep.subr.bf16.mxu0 0
        %883 = vmatpush1.bf16.msra.mxu0 0
        %884 = vmatprep.subr.bf16.mxu0 0
        %885 = vmatpush1.bf16.msra.mxu0 %v868
        %886 = vmatprep.subr.bf16.mxu0 0
        %887 = vmatpush2.bf16.msra.mxu0 0
        %888 = vmatprep.subr.bf16.mxu0 0
        %889 = vmatpush2.bf16.msra.mxu0 0
        %890 = vmatprep.subr.bf16.mxu0 0
        %891 = vmatpush2.bf16.msra.mxu0 0
        %892 = vmatprep.subr.bf16.mxu0 0
        %893 = vmatpush2.bf16.msra.mxu0 0
        %894 = vmatprep.subr.bf16.mxu0 0
        %895 = vmatpush2.bf16.msra.mxu0 0
        %896 = vmatprep.subr.bf16.mxu0 0
        %897 = vmatpush2.bf16.msra.mxu0 0
        %898 = vmatprep.subr.bf16.mxu0 0
        %899 = vmatpush2.bf16.msra.mxu0 0
        %900 = vmatprep.subr.bf16.mxu0 0
        %901 = vmatpush2.bf16.msra.mxu0 0
        %902 = vmatprep.mubr.bf16.mxu0 0
        %903 = vmatmul.mubr.bf16.gmra.mxu0 %v864
        %v904 = vpop.f32.mrf.mxu0
        %v905 = vadd.f32 0.0, %v904
        %v906 = vpop.f32.mrf.mxu0
        %v907 = vpop.f32.mrf.mxu0
        %v908 = vpop.f32.mrf.mxu0
        %909 = vdwg.mxu0
        %910 = vrot.lane.b32.xlu0 %v598, 64
        %v911 = vpop.permute.xlu0 %910
        %v913 = vsel %vm609, %v858, 0
        %v916 = vsel %vm866, %v911, 0
        %918 = vmatprep.subr.bf16.mxu0 0
        %919 = vmatpush1.bf16.msra.mxu0 0
        %920 = vmatprep.subr.bf16.mxu0 0
        %921 = vmatpush1.bf16.msra.mxu0 0
        %922 = vmatprep.subr.bf16.mxu0 0
        %923 = vmatpush1.bf16.msra.mxu0 0
        %924 = vmatprep.subr.bf16.mxu0 0
        %925 = vmatpush1.bf16.msra.mxu0 0
        %926 = vmatprep.subr.bf16.mxu0 0
        %927 = vmatpush1.bf16.msra.mxu0 0
        %928 = vmatprep.subr.bf16.mxu0 0
        %929 = vmatpush1.bf16.msra.mxu0 0
        %930 = vmatprep.subr.bf16.mxu0 0
        %931 = vmatpush1.bf16.msra.mxu0 0
        %932 = vmatprep.subr.bf16.mxu0 0
        %933 = vmatpush1.bf16.msra.mxu0 %v916
        %934 = vmatprep.subr.bf16.mxu0 0
        %935 = vmatpush2.bf16.msra.mxu0 0
        %936 = vmatprep.subr.bf16.mxu0 0
        %937 = vmatpush2.bf16.msra.mxu0 0
        %938 = vmatprep.subr.bf16.mxu0 0
        %939 = vmatpush2.bf16.msra.mxu0 0
        %940 = vmatprep.subr.bf16.mxu0 0
        %941 = vmatpush2.bf16.msra.mxu0 0
        %942 = vmatprep.subr.bf16.mxu0 0
        %943 = vmatpush2.bf16.msra.mxu0 0
        %944 = vmatprep.subr.bf16.mxu0 0
        %945 = vmatpush2.bf16.msra.mxu0 0
        %946 = vmatprep.subr.bf16.mxu0 0
        %947 = vmatpush2.bf16.msra.mxu0 0
        %948 = vmatprep.subr.bf16.mxu0 0
        %949 = vmatpush2.bf16.msra.mxu0 0
        %950 = vmatprep.mubr.bf16.mxu0 0
        %951 = vmatmul.mubr.bf16.gmra.mxu0 %v913
        %v952 = vpop.f32.mrf.mxu0
        %v953 = vadd.f32 0.0, %v952
        %v954 = vpop.f32.mrf.mxu0
        %v955 = vpop.f32.mrf.mxu0
        %v956 = vpop.f32.mrf.mxu0
        %957 = vdwg.mxu0
        %958 = vrot.lane.b32.xlu0 %v599, 64
        %v959 = vpop.permute.xlu0 %958
        %v961 = vsel %vm609, %v859, 0
        %v964 = vsel %vm866, %v959, 0
        %966 = vmatprep.subr.bf16.mxu0 0
        %967 = vmatpush1.bf16.msra.mxu0 0
        %968 = vmatprep.subr.bf16.mxu0 0
        %969 = vmatpush1.bf16.msra.mxu0 0
        %970 = vmatprep.subr.bf16.mxu0 0
        %971 = vmatpush1.bf16.msra.mxu0 0
        %972 = vmatprep.subr.bf16.mxu0 0
        %973 = vmatpush1.bf16.msra.mxu0 0
        %974 = vmatprep.subr.bf16.mxu0 0
        %975 = vmatpush1.bf16.msra.mxu0 0
        %976 = vmatprep.subr.bf16.mxu0 0
        %977 = vmatpush1.bf16.msra.mxu0 0
        %978 = vmatprep.subr.bf16.mxu0 0
        %979 = vmatpush1.bf16.msra.mxu0 0
        %980 = vmatprep.subr.bf16.mxu0 0
        %981 = vmatpush1.bf16.msra.mxu0 %v964
        %982 = vmatprep.subr.bf16.mxu0 0
        %983 = vmatpush2.bf16.msra.mxu0 0
        %984 = vmatprep.subr.bf16.mxu0 0
        %985 = vmatpush2.bf16.msra.mxu0 0
        %986 = vmatprep.subr.bf16.mxu0 0
        %987 = vmatpush2.bf16.msra.mxu0 0
        %988 = vmatprep.subr.bf16.mxu0 0
        %989 = vmatpush2.bf16.msra.mxu0 0
        %990 = vmatprep.subr.bf16.mxu0 0
        %991 = vmatpush2.bf16.msra.mxu0 0
        %992 = vmatprep.subr.bf16.mxu0 0
        %993 = vmatpush2.bf16.msra.mxu0 0
        %994 = vmatprep.subr.bf16.mxu0 0
        %995 = vmatpush2.bf16.msra.mxu0 0
        %996 = vmatprep.subr.bf16.mxu0 0
        %997 = vmatpush2.bf16.msra.mxu0 0
        %998 = vmatprep.mubr.bf16.mxu0 0
        %999 = vmatmul.mubr.bf16.gmra.mxu0 %v961
        %v1000 = vpop.f32.mrf.mxu0
        %v1001 = vadd.f32 0.0, %v1000
        %v1002 = vpop.f32.mrf.mxu0
        %v1003 = vpop.f32.mrf.mxu0
        %v1004 = vpop.f32.mrf.mxu0
        %1005 = vdwg.mxu0
        %1006 = vrot.lane.b32.xlu0 %v600, 64
        %v1007 = vpop.permute.xlu0 %1006
        %v1009 = vsel %vm609, %v860, 0
        %v1012 = vsel %vm866, %v1007, 0
        %1014 = vmatprep.subr.bf16.mxu0 0
        %1015 = vmatpush1.bf16.msra.mxu0 0
        %1016 = vmatprep.subr.bf16.mxu0 0
        %1017 = vmatpush1.bf16.msra.mxu0 0
        %1018 = vmatprep.subr.bf16.mxu0 0
        %1019 = vmatpush1.bf16.msra.mxu0 0
        %1020 = vmatprep.subr.bf16.mxu0 0
        %1021 = vmatpush1.bf16.msra.mxu0 0
        %1022 = vmatprep.subr.bf16.mxu0 0
        %1023 = vmatpush1.bf16.msra.mxu0 0
        %1024 = vmatprep.subr.bf16.mxu0 0
        %1025 = vmatpush1.bf16.msra.mxu0 0
        %1026 = vmatprep.subr.bf16.mxu0 0
        %1027 = vmatpush1.bf16.msra.mxu0 0
        %1028 = vmatprep.subr.bf16.mxu0 0
        %1029 = vmatpush1.bf16.msra.mxu0 %v1012
        %1030 = vmatprep.subr.bf16.mxu0 0
        %1031 = vmatpush2.bf16.msra.mxu0 0
        %1032 = vmatprep.subr.bf16.mxu0 0
        %1033 = vmatpush2.bf16.msra.mxu0 0
        %1034 = vmatprep.subr.bf16.mxu0 0
        %1035 = vmatpush2.bf16.msra.mxu0 0
        %1036 = vmatprep.subr.bf16.mxu0 0
        %1037 = vmatpush2.bf16.msra.mxu0 0
        %1038 = vmatprep.subr.bf16.mxu0 0
        %1039 = vmatpush2.bf16.msra.mxu0 0
        %1040 = vmatprep.subr.bf16.mxu0 0
        %1041 = vmatpush2.bf16.msra.mxu0 0
        %1042 = vmatprep.subr.bf16.mxu0 0
        %1043 = vmatpush2.bf16.msra.mxu0 0
        %1044 = vmatprep.subr.bf16.mxu0 0
        %1045 = vmatpush2.bf16.msra.mxu0 0
        %1046 = vmatprep.mubr.bf16.mxu0 0
        %1047 = vmatmul.mubr.bf16.gmra.mxu0 %v1009
        %v1048 = vpop.f32.mrf.mxu0
        %v1049 = vadd.f32 0.0, %v1048
        %v1050 = vpop.f32.mrf.mxu0
        %v1051 = vpop.f32.mrf.mxu0
        %v1052 = vpop.f32.mrf.mxu0
        %1053 = vdwg.mxu0
        %1055 = vrot.lane.b32.xlu0 %v953, 8
        %v1056 = vpop.permute.xlu0 %1055
        %1059 = vrot.lane.b32.xlu0 %v1001, 16
        %v1060 = vpop.permute.xlu0 %1059
        %1063 = vrot.lane.b32.xlu0 %v1049, 24
        %v1064 = vpop.permute.xlu0 %1063
        %v1066 = vsel %vm609, %v905, %v1056
        %vm1067 = vcmask 130048
        %v1068 = vsel %vm1067, %v1066, %v1060
        %vm1069 = vcmask 195584
        %v1070 = vsel %vm1069, %v1068, %v1064
        %v1071 = vpack.c.bf16 %v1070, %v1070
        %v1072 = vld [vmem:[%s407] sm:$0xf]
        %v1073 = vld [vmem:[%s407 + $0x4] sm:$0xf]
        %v1074 = vld [vmem:[%s407 + $0x8] sm:$0xf]
        %v1075 = vld [vmem:[%s407 + $0xc] sm:$0xf]
        %v1076 = vld [vmem:[%s467] sm:$0x1]
        %v1078 = vlaneseq
        %v1079 = vshrl.u32 %v1078, 7
        %v1080 = vsub.s32 0, %v1079
        %v1081 = vrot.slane %v1076, %v1080
        %v1087 = vunpack.c.l.b16 %v1072
        %v1088 = vunpack.c.l.b16 %v1073
        %v1089 = vunpack.c.l.b16 %v1074
        %v1090 = vunpack.c.l.b16 %v1075
        %v1091 = vpack.c.b16 %v1088, %v1087
        %v1092 = vpack.c.b16 %v1090, %v1089
        %v1096 = vsel %vm491, %v1071, 0
        %1098 = vmatprep.subr.bf16.mxu0 0
        %1099 = vmatpush1.bf16.msra.mxu0 0
        %1100 = vmatprep.subr.bf16.mxu0 0
        %1101 = vmatpush1.bf16.msra.mxu0 0
        %1102 = vmatprep.subr.bf16.mxu0 0
        %1103 = vmatpush1.bf16.msra.mxu0 0
        %1104 = vmatprep.subr.bf16.mxu0 0
        %1105 = vmatpush1.bf16.msra.mxu0 0
        %1106 = vmatprep.subr.bf16.mxu0 0
        %1107 = vmatpush1.bf16.msra.mxu0 0
        %1108 = vmatprep.subr.bf16.mxu0 0
        %1109 = vmatpush1.bf16.msra.mxu0 0
        %1110 = vmatprep.subr.bf16.mxu0 0
        %1111 = vmatpush1.bf16.msra.mxu0 %v1092
        %1112 = vmatprep.subr.bf16.mxu0 0
        %1113 = vmatpush1.bf16.msra.mxu0 %v1091
        %1114 = vmatprep.subr.bf16.mxu0 0
        %1115 = vmatpush2.bf16.msra.mxu0 0
        %1116 = vmatprep.subr.bf16.mxu0 0
        %1117 = vmatpush2.bf16.msra.mxu0 0
        %1118 = vmatprep.subr.bf16.mxu0 0
        %1119 = vmatpush2.bf16.msra.mxu0 0
        %1120 = vmatprep.subr.bf16.mxu0 0
        %1121 = vmatpush2.bf16.msra.mxu0 0
        %1122 = vmatprep.subr.bf16.mxu0 0
        %1123 = vmatpush2.bf16.msra.mxu0 0
        %1124 = vmatprep.subr.bf16.mxu0 0
        %1125 = vmatpush2.bf16.msra.mxu0 0
        %1126 = vmatprep.subr.bf16.mxu0 0
        %1127 = vmatpush2.bf16.msra.mxu0 0
        %1128 = vmatprep.subr.bf16.mxu0 0
        %1129 = vmatpush2.bf16.msra.mxu0 0
        %1130 = vmatprep.mubr.bf16.mxu0 0
        %1131 = vmatmul.mubr.bf16.gmra.mxu0 %v1096
        %v1132 = vpop.f32.mrf.mxu0
        %v1133 = vadd.f32 %v1081, %v1132
        %v1134 = vpop.f32.mrf.mxu0
        %v1135 = vpop.f32.mrf.mxu0
        %v1136 = vpop.f32.mrf.mxu0
        %1137 = vdwg.mxu0
        %v1138 = vadd.f32 %v488, %v1133
        %v1139 = vld [vmem:[%s476] sm:$0x1]
        %v1140 = vld [vmem:[%s479] sm:$0x1]
        %v1141 = vsel %vm491, %v1138, 0.0
        %1142 = vadd.xlane.f32.xlu0 %v1141
        %v1143 = vpop.xlane.xlu0 %1142
        %v1144 = vmul.f32 %v1143, %v495
        %v1145 = vsub.f32 %v1138, %v1144
        %v1146 = vmul.f32 %v1145, %v1145
        %v1147 = vsel %vm491, %v1146, 0.0
        %1148 = vadd.xlane.f32.xlu0 %v1147
        %v1149 = vpop.xlane.xlu0 %1148
        %v1150 = vmul.f32 %v1149, %v495
        %v1152 = vlaneseq
        %v1153 = vshrl.u32 %v1152, 7
        %v1154 = vsub.s32 0, %v1153
        %v1155 = vrot.slane %v1139, %v1154
        %v1157 = vmul.f32 %v1155, %v1145
        %v1158 = vadd.f32 %v1150, 1e-05
        %v1159 = vrsqrt.pop %v1158
        %v1160 = vmul.f32 %v1158, %v1159
        %vm1161 = vcmp.eq.f32.partialorder %v1158, inf
        %v1162 = vsel %vm1161, %v1158, %v1160
        %vm1163 = vcmp.eq.f32.partialorder %v1158, 0.0
        %v1164 = vand.u32 %v1158, 2147483648
        %v1165 = vsel %vm1163, %v1164, %v1162
        %v1166 = vrcp.pop %v1165
        %v1167 = vmul.f32 %v1157, %v1166
        %v1169 = vlaneseq
        %v1170 = vshrl.u32 %v1169, 7
        %v1171 = vsub.s32 0, %v1170
        %v1172 = vrot.slane %v1140, %v1171
        %v1174 = vadd.f32 %v1167, %v1172
        %v1175 = vadd.f32 %v1138, %v1174
        %1176 = vst.msk [vmem:[%s464] sm:$0xff] %vm491, %v1175
        %s1177 = sand.u32 %s256, 1
        %s1178 = scalar_lea.sflag [#allocation4], %s1177
        %s1179 = sand.u32 %s256, 1
        %s1180 = smul.addr %s1179, 8
        %s1181 = scalar_lea.vmem [#allocation8], %s1180
        // Predicated region
        $region69: #{tpu_custom_call.1} parent=51 // pred_check
          %p1182 = pneg %p266
        $region70: #{tpu_custom_call.1} parent=51 // pred_check_branch
          %1184 = sbr.rel (%p1182) target = $region72
        $region71: #{tpu_custom_call.1} parent=51 // pred_region
          %s1186 = ssub.s32 128, 128
          %1187 = vsyncadd %s1178, %s1186
          %s1188 = smul.addr %s32, 128
          %s1189 = scalar_lea.hbm %s8, %s1188
          %s1191 = sshll.u32 %s1181, 4
          %s1192 = int_to_ptr.vmem [resolvable:$true] %s1191
          %1194 = dma.vmem_to_hbm [thread:$0]  %s1192, 128, %s1189, %s1178
        $region72: #{tpu_custom_call.1} parent=51 // pred_fallthru
          _
      $region52: #{tpu_custom_call.1} parent=5 // pred_fallthru
        _
      %p1195 = scmp.le.s32.totalorder 2, %s23
      // Predicated region
      $region73: #{tpu_custom_call.1} parent=5 // pred_check
        %p1196 = pneg %p1195
      $region74: #{tpu_custom_call.1} parent=5 // pred_check_branch
        %1198 = sbr.rel (%p1196) target = $region76
      $region75: #{tpu_custom_call.1} parent=5 // pred_region
        %s1199 = ssub.s32 %s23, 2
        // Predicated region
        $region77: #{tpu_custom_call.1} parent=75 // pred_check
          %p1200 = pneg %p272
        $region78: #{tpu_custom_call.1} parent=75 // pred_check_branch
          %1202 = sbr.rel (%p1200) target = $region80
        $region79: #{tpu_custom_call.1} parent=75 // pred_region
          %s1203 = sand.u32 %s257, 1
          %s1204 = scalar_lea.sflag [#allocation4], %s1203
          %s1205 = sand.u32 %s257, 1
          %s1206 = smul.addr %s1205, 8
          %s1207 = scalar_lea.vmem [#allocation8], %s1206
          %1208 = dma.done %s1204, 128
        $region80: #{tpu_custom_call.1} parent=75 // pred_fallthru
          _
      $region76: #{tpu_custom_call.1} parent=5 // pred_fallthru
        _
    $region6: #{tpu_custom_call.1} parent=1 // loop_footer
      %s27 = sadd.s32 1, %s23
    $region7: #{tpu_custom_call.1} parent=1 // loop_footer_branch
      %22 = sbr.rel target = $region3
    $region8: #{tpu_custom_call.1} parent=1 // loop_exit
      _
    %1209 = vsyncpa [#allocation3], 1
    %s1210 = scalar_lea.sflag [#allocation3], 1
    %1211 = vsyncpa %s1210, 1
    %1212 = vsyncpa [#allocation6], 1
    %s1213 = scalar_lea.sflag [#allocation6], 1
    %1214 = vsyncpa %s1213, 1
    %1215 = vsyncpa [#allocation4], 1
    %s1216 = scalar_lea.sflag [#allocation4], 1
    %1217 = vsyncpa %s1216, 1

</llo_original>
